<compile_context>
chip_gen: v5e
topology: v5e:2x2
jax: 0.10.0
libtpu: 0.0.40
codegen_flags: <defaults>
</compile_context>

<pallas_src>
import functools

import jax
import jax.numpy as jnp
from jax.experimental import pallas as pl
from jax.experimental.pallas import tpu as pltpu


def _round_up(x, m):
    return (x + m - 1) // m * m


@functools.lru_cache(maxsize=1)
def _vmem_capacity_bytes():
    try:
        cap = int(getattr(pltpu.get_tpu_info(), "vmem_capacity_bytes", 0))
        if cap > 0:
            return cap
    except Exception:
        pass
    return 64 * 1024 * 1024  # conservative fallback (v7x per-core VMEM)


def _pick_tile_b(B, N, D, itemsize):
    """Largest batch tile whose double-buffered inputs fit the VMEM budget."""
    cap = _vmem_capacity_bytes()
    budget = int(cap * 0.35)                 # headroom for outputs + internal scratch
    row_bytes = 2 * (N + 2) * D * itemsize   # double-buffered bytes per batch row
    tb = budget // max(row_bytes, 1)
    sub = 16 if itemsize == 2 else 8         # packed-tile second-minor granularity
    tb_cap = 512 if itemsize == 2 else 256   # vreg-pressure cap
    tb = max(sub, min(tb_cap, int(tb)))
    tb = (tb // sub) * sub
    full = _round_up(B, sub)
    if full <= tb:
        return full                          # a single tile covers the whole batch
    return tb


def _skipgram_loss_kernel(ivec_ref, ovec_ref, nvec_ref, out_ref, *,
                          true_batch, n_negs):
    """One batch tile -> one (1,8,128) block holding this tile's partial sum.

    partial = sum over valid rows b of
        log sigmoid(<o_b, i_b>) + sum_n log sigmoid(-<neg_{n,b}, i_b>)
    """
    pid = pl.program_id(0)
    tile_b = ivec_ref.shape[0]

    # Rows beyond the true batch are index-padding; mask their contribution.
    row = pid * tile_b + jax.lax.broadcasted_iota(jnp.int32, (tile_b, 1), 0)
    valid = (row < true_batch).astype(jnp.float32)            # (TB, 1)

    def masked_logsig_sum(score):
        # Numerically stable log(sigmoid(x)) = min(x, 0) - log(1 + exp(-|x|)).
        ls = jnp.minimum(score, 0.0) - jnp.log(1.0 + jnp.exp(-jnp.abs(score)))
        return jnp.sum(ls * valid, keepdims=True)             # (1, 1)

    # Positive term: lane-reduce over D.
    ivec = ivec_ref[...].astype(jnp.float32)                  # (TB, D)
    o_score = jnp.sum(ovec_ref[...].astype(jnp.float32) * ivec,
                      axis=-1, keepdims=True)                 # (TB, 1)
    total = masked_logsig_sum(o_score)

    # Negative terms: statically unrolled (n_negs is small & static) so the
    # scheduler can overlap slab n+1 loads with slab n compute; ivec is
    # re-read from VMEM per slab (3 vld/cycle) rather than held in vregs.
    for n in range(n_negs):
        ivec_n = ivec_ref[...].astype(jnp.float32)            # (TB, D)
        nvec_n = nvec_ref[n].astype(jnp.float32)              # (TB, D)
        n_score = -jnp.sum(nvec_n * ivec_n, axis=-1, keepdims=True)
        total = total + masked_logsig_sum(n_score)

    out_ref[...] = jnp.broadcast_to(total.reshape(1, 1, 1), out_ref.shape)


def skipgram_forward(iwords, owords, nwords, W_in, W_out, *,
                     tile_b=None, compute_dtype=jnp.bfloat16):
    """Full SkipGram.forward: gathers in JAX, loss math in the Pallas kernel."""
    B = iwords.shape[0]
    N = nwords.shape[1]
    D = W_in.shape[1]
    itemsize = jnp.dtype(compute_dtype).itemsize

    if tile_b is None:
        tile_b = _pick_tile_b(B, N, D, itemsize)

    padded_B = _round_up(B, tile_b)
    if padded_B != B:
        pad = padded_B - B
        # Pad the tiny int32 index arrays (not the gathered embeddings) so the
        # gather emits padded rows for free; padded rows are masked in-kernel.
        iwords = jnp.pad(iwords, (0, pad))
        owords = jnp.pad(owords, (0, pad))
        nwords = jnp.pad(nwords, ((0, pad), (0, 0)))

    # Embedding gathers (glue; stays in XLA). Streamed to the kernel in
    # compute_dtype (bf16 by default) to halve HBM bytes; math is f32 inside.
    ivec = jnp.take(W_in, iwords, axis=0).astype(compute_dtype)       # (pB, D)
    ovec = jnp.take(W_out, owords, axis=0).astype(compute_dtype)      # (pB, D)
    # Negatives laid out (N, pB, D): each (tile_b, D) slab lines up with ivec.
    nvec = jnp.take(W_out, nwords.T.reshape(-1), axis=0)
    nvec = nvec.reshape(N, padded_B, D).astype(compute_dtype)         # (N, pB, D)

    num_tiles = padded_B // tile_b
    kernel = functools.partial(_skipgram_loss_kernel, true_batch=B, n_negs=N)
    vmem_cap = _vmem_capacity_bytes()

    partials = pl.pallas_call(
        kernel,
        out_shape=jax.ShapeDtypeStruct((num_tiles, 8, 128), jnp.float32),
        grid=(num_tiles,),
        in_specs=[
            pl.BlockSpec((tile_b, D), lambda i: (i, 0)),
            pl.BlockSpec((tile_b, D), lambda i: (i, 0)),
            pl.BlockSpec((N, tile_b, D), lambda i: (0, i, 0)),
        ],
        out_specs=pl.BlockSpec((1, 8, 128), lambda i: (i, 0, 0)),
        compiler_params=pltpu.CompilerParams(
            dimension_semantics=("parallel",),
            vmem_limit_bytes=int(vmem_cap * 0.65),
        ),
    )(ivec, ovec, nvec)

    # Tiny finalize in JAX: loss = -(sum of per-tile partial sums) / B.
    return -jnp.sum(partials[:, 0, 0]) / B


def skipgram_reference(iwords, owords, nwords, W_in, W_out):
    """Pure-JAX reference mirroring the PyTorch forward, for verification."""
    B, N = nwords.shape
    D = W_in.shape[1]
    ivec = jnp.take(W_in, iwords, axis=0)
    ovec = jnp.take(W_out, owords, axis=0)
    nvec = -jnp.take(W_out, nwords.reshape(-1), axis=0).reshape(B, N, D)
    oloss = jnp.log(jax.nn.sigmoid(jnp.sum(ovec * ivec, axis=-1)))
    nscore = jnp.einsum("bnd,bd->bn", nvec, ivec)
    nloss = jnp.sum(jnp.log(jax.nn.sigmoid(nscore)), axis=-1)
    return -jnp.mean(oloss + nloss)


if __name__ == "__main__":
    # Small synthetic shapes: vocab=64, emb_dim=128, batch=10, n_negs=16.
    V, D, B, N = 64, 128, 10, 16
    key = jax.random.PRNGKey(0)
    k1, k2, k3, k4, k5 = jax.random.split(key, 5)

    W_in = jax.random.normal(k1, (V, D), jnp.float32) * 0.1
    W_out = jax.random.normal(k2, (V, D), jnp.float32) * 0.1

    iwords = jax.random.randint(k3, (B,), 0, V, dtype=jnp.int32)
    owords = jax.random.randint(k4, (B,), 0, V, dtype=jnp.int32)
    nwords = jax.random.randint(k5, (B, N), 0, V, dtype=jnp.int32)

    ref = skipgram_reference(iwords, owords, nwords, W_in, W_out)

    # 1) f32 end-to-end (B=10 exercises index padding + in-kernel masking).
    loss_f32 = jax.jit(functools.partial(
        skipgram_forward, compute_dtype=jnp.float32))(
        iwords, owords, nwords, W_in, W_out)
    jax.block_until_ready(loss_f32)
    assert jnp.allclose(loss_f32, ref, atol=1e-4, rtol=1e-4), (loss_f32, ref)

    # 2) default bf16 streaming path (f32 accumulation inside the kernel).
    loss_bf16 = jax.jit(skipgram_forward)(iwords, owords, nwords, W_in, W_out)
    jax.block_until_ready(loss_bf16)
    assert jnp.allclose(loss_bf16, ref, atol=5e-2, rtol=2e-2), (loss_bf16, ref)

    # 3) multi-tile "parallel" path: several batch tiles + padded last tile.
    B2 = 20
    k6, k7, k8 = jax.random.split(jax.random.PRNGKey(1), 3)
    iw2 = jax.random.randint(k6, (B2,), 0, V, dtype=jnp.int32)
    ow2 = jax.random.randint(k7, (B2,), 0, V, dtype=jnp.int32)
    nw2 = jax.random.randint(k8, (B2, N), 0, V, dtype=jnp.int32)
    ref2 = skipgram_reference(iw2, ow2, nw2, W_in, W_out)
    loss2 = jax.jit(functools.partial(
        skipgram_forward, compute_dtype=jnp.float32, tile_b=8))(
        iw2, ow2, nw2, W_in, W_out)
    jax.block_until_ready(loss2)
    assert jnp.allclose(loss2, ref2, atol=1e-4, rtol=1e-4), (loss2, ref2)

    print("KERNEL_OK")
</pallas_src>

<mosaic_0001>
module attributes {stable_mosaic.version = 11 : i64} {
  func.func @_skipgram_loss_kernel(%arg0: i32, %arg1: memref<16x128xf32, #tpu.memory_space<vmem>>, %arg2: memref<16x128xf32, #tpu.memory_space<vmem>>, %arg3: memref<16x16x128xf32, #tpu.memory_space<vmem>>, %arg4: memref<1x8x128xf32, #tpu.memory_space<vmem>>) attributes {dimension_semantics = [#tpu.dimension_semantics<parallel>], iteration_bounds = array<i64: 1>, scalar_prefetch = 0 : i64, scratch_operands = 0 : i64, tpu.core_type = #tpu.core_type<tc>, window_params = [{transform_indices = @transform_0, window_bounds = array<i64: 16, 128>}, {transform_indices = @transform_1, window_bounds = array<i64: 16, 128>}, {transform_indices = @transform_2, window_bounds = array<i64: 16, 16, 128>}, {transform_indices = @transform_3, window_bounds = array<i64: 1, 8, 128>}]} {
    %c16_i32 = arith.constant 16 : i32
    %0 = arith.muli %arg0, %c16_i32 : i32
    %1 = tpu.iota {dimensions = array<i32: 0>} : vector<16x1xi32>
    %2 = vector.broadcast %0 : i32 to vector<16x1xi32>
    %3 = arith.addi %2, %1 : vector<16x1xi32>
    %c10_i32 = arith.constant 10 : i32
    %4 = vector.broadcast %c10_i32 : i32 to vector<16x1xi32>
    %5 = arith.cmpi slt, %3, %4 : vector<16x1xi32>
    %6 = arith.extui %5 : vector<16x1xi1> to vector<16x1xi32>
    %7 = arith.sitofp %6 : vector<16x1xi32> to vector<16x1xf32>
    %c0 = arith.constant 0 : index
    %c0_0 = arith.constant 0 : index
    %8 = vector.load %arg1[%c0, %c0_0] : memref<16x128xf32, #tpu.memory_space<vmem>>, vector<16x128xf32>
    %c0_1 = arith.constant 0 : index
    %c0_2 = arith.constant 0 : index
    %9 = vector.load %arg2[%c0_1, %c0_2] : memref<16x128xf32, #tpu.memory_space<vmem>>, vector<16x128xf32>
    %10 = arith.mulf %9, %8 : vector<16x128xf32>
    %cst = arith.constant dense<0.000000e+00> : vector<16xf32>
    %11 = vector.multi_reduction <add>, %10, %cst [1] : vector<16x128xf32> to vector<16xf32>
    %12 = vector.shape_cast %11 : vector<16xf32> to vector<16x1xf32>
    %cst_3 = arith.constant 0.000000e+00 : f32
    %13 = vector.broadcast %cst_3 : f32 to vector<16x1xf32>
    %14 = arith.minimumf %12, %13 : vector<16x1xf32>
    %15 = math.absf %12 : vector<16x1xf32>
    %cst_4 = arith.constant 0.000000e+00 : f32
    %16 = vector.broadcast %cst_4 : f32 to vector<16x1xf32>
    %17 = arith.subf %16, %15 : vector<16x1xf32>
    %18 = math.exp %17 : vector<16x1xf32>
    %cst_5 = arith.constant 1.000000e+00 : f32
    %19 = vector.broadcast %cst_5 : f32 to vector<16x1xf32>
    %20 = arith.addf %19, %18 : vector<16x1xf32>
    %21 = math.log %20 : vector<16x1xf32>
    %22 = arith.subf %14, %21 : vector<16x1xf32>
    %23 = arith.mulf %22, %7 : vector<16x1xf32>
    %24 = vector.shape_cast %23 : vector<16x1xf32> to vector<1x16x1xf32>
    %cst_6 = arith.constant dense<0.000000e+00> : vector<1xf32>
    %25 = vector.multi_reduction <add>, %24, %cst_6 [1, 2] : vector<1x16x1xf32> to vector<1xf32>
    %26 = vector.shape_cast %25 : vector<1xf32> to vector<1x1x1xf32>
    %27 = vector.extract %26[0, 0, 0] : f32 from vector<1x1x1xf32>
    %28 = vector.broadcast %27 : f32 to vector<1x1xf32>
    %c0_7 = arith.constant 0 : index
    %c0_8 = arith.constant 0 : index
    %29 = vector.load %arg1[%c0_7, %c0_8] : memref<16x128xf32, #tpu.memory_space<vmem>>, vector<16x128xf32>
    %c0_9 = arith.constant 0 : index
    %c0_10 = arith.constant 0 : index
    %c0_11 = arith.constant 0 : index
    %30 = vector.load %arg3[%c0_9, %c0_10, %c0_11] : memref<16x16x128xf32, #tpu.memory_space<vmem>>, vector<1x16x128xf32>
    %31 = vector.shape_cast %30 : vector<1x16x128xf32> to vector<16x128xf32>
    %32 = arith.mulf %31, %29 : vector<16x128xf32>
    %cst_12 = arith.constant dense<0.000000e+00> : vector<16xf32>
    %33 = vector.multi_reduction <add>, %32, %cst_12 [1] : vector<16x128xf32> to vector<16xf32>
    %34 = vector.shape_cast %33 : vector<16xf32> to vector<16x1xf32>
    %cst_13 = arith.constant 0.000000e+00 : f32
    %35 = vector.broadcast %cst_13 : f32 to vector<16x1xf32>
    %36 = arith.subf %35, %34 : vector<16x1xf32>
    %cst_14 = arith.constant 0.000000e+00 : f32
    %37 = vector.broadcast %cst_14 : f32 to vector<16x1xf32>
    %38 = arith.minimumf %36, %37 : vector<16x1xf32>
    %39 = math.absf %36 : vector<16x1xf32>
    %cst_15 = arith.constant 0.000000e+00 : f32
    %40 = vector.broadcast %cst_15 : f32 to vector<16x1xf32>
    %41 = arith.subf %40, %39 : vector<16x1xf32>
    %42 = math.exp %41 : vector<16x1xf32>
    %cst_16 = arith.constant 1.000000e+00 : f32
    %43 = vector.broadcast %cst_16 : f32 to vector<16x1xf32>
    %44 = arith.addf %43, %42 : vector<16x1xf32>
    %45 = math.log %44 : vector<16x1xf32>
    %46 = arith.subf %38, %45 : vector<16x1xf32>
    %47 = arith.mulf %46, %7 : vector<16x1xf32>
    %48 = vector.shape_cast %47 : vector<16x1xf32> to vector<1x16x1xf32>
    %cst_17 = arith.constant dense<0.000000e+00> : vector<1xf32>
    %49 = vector.multi_reduction <add>, %48, %cst_17 [1, 2] : vector<1x16x1xf32> to vector<1xf32>
    %50 = vector.shape_cast %49 : vector<1xf32> to vector<1x1x1xf32>
    %51 = vector.extract %50[0, 0, 0] : f32 from vector<1x1x1xf32>
    %52 = vector.broadcast %51 : f32 to vector<1x1xf32>
    %53 = arith.addf %28, %52 : vector<1x1xf32>
    %c0_18 = arith.constant 0 : index
    %c0_19 = arith.constant 0 : index
    %54 = vector.load %arg1[%c0_18, %c0_19] : memref<16x128xf32, #tpu.memory_space<vmem>>, vector<16x128xf32>
    %c1 = arith.constant 1 : index
    %c0_20 = arith.constant 0 : index
    %c0_21 = arith.constant 0 : index
    %55 = vector.load %arg3[%c1, %c0_20, %c0_21] : memref<16x16x128xf32, #tpu.memory_space<vmem>>, vector<1x16x128xf32>
    %56 = vector.shape_cast %55 : vector<1x16x128xf32> to vector<16x128xf32>
    %57 = arith.mulf %56, %54 : vector<16x128xf32>
    %cst_22 = arith.constant dense<0.000000e+00> : vector<16xf32>
    %58 = vector.multi_reduction <add>, %57, %cst_22 [1] : vector<16x128xf32> to vector<16xf32>
    %59 = vector.shape_cast %58 : vector<16xf32> to vector<16x1xf32>
    %cst_23 = arith.constant 0.000000e+00 : f32
    %60 = vector.broadcast %cst_23 : f32 to vector<16x1xf32>
    %61 = arith.subf %60, %59 : vector<16x1xf32>
    %cst_24 = arith.constant 0.000000e+00 : f32
    %62 = vector.broadcast %cst_24 : f32 to vector<16x1xf32>
    %63 = arith.minimumf %61, %62 : vector<16x1xf32>
    %64 = math.absf %61 : vector<16x1xf32>
    %cst_25 = arith.constant 0.000000e+00 : f32
    %65 = vector.broadcast %cst_25 : f32 to vector<16x1xf32>
    %66 = arith.subf %65, %64 : vector<16x1xf32>
    %67 = math.exp %66 : vector<16x1xf32>
    %cst_26 = arith.constant 1.000000e+00 : f32
    %68 = vector.broadcast %cst_26 : f32 to vector<16x1xf32>
    %69 = arith.addf %68, %67 : vector<16x1xf32>
    %70 = math.log %69 : vector<16x1xf32>
    %71 = arith.subf %63, %70 : vector<16x1xf32>
    %72 = arith.mulf %71, %7 : vector<16x1xf32>
    %73 = vector.shape_cast %72 : vector<16x1xf32> to vector<1x16x1xf32>
    %cst_27 = arith.constant dense<0.000000e+00> : vector<1xf32>
    %74 = vector.multi_reduction <add>, %73, %cst_27 [1, 2] : vector<1x16x1xf32> to vector<1xf32>
    %75 = vector.shape_cast %74 : vector<1xf32> to vector<1x1x1xf32>
    %76 = vector.extract %75[0, 0, 0] : f32 from vector<1x1x1xf32>
    %77 = vector.broadcast %76 : f32 to vector<1x1xf32>
    %78 = arith.addf %53, %77 : vector<1x1xf32>
    %c0_28 = arith.constant 0 : index
    %c0_29 = arith.constant 0 : index
    %79 = vector.load %arg1[%c0_28, %c0_29] : memref<16x128xf32, #tpu.memory_space<vmem>>, vector<16x128xf32>
    %c2 = arith.constant 2 : index
    %c0_30 = arith.constant 0 : index
    %c0_31 = arith.constant 0 : index
    %80 = vector.load %arg3[%c2, %c0_30, %c0_31] : memref<16x16x128xf32, #tpu.memory_space<vmem>>, vector<1x16x128xf32>
    %81 = vector.shape_cast %80 : vector<1x16x128xf32> to vector<16x128xf32>
    %82 = arith.mulf %81, %79 : vector<16x128xf32>
    %cst_32 = arith.constant dense<0.000000e+00> : vector<16xf32>
    %83 = vector.multi_reduction <add>, %82, %cst_32 [1] : vector<16x128xf32> to vector<16xf32>
    %84 = vector.shape_cast %83 : vector<16xf32> to vector<16x1xf32>
    %cst_33 = arith.constant 0.000000e+00 : f32
    %85 = vector.broadcast %cst_33 : f32 to vector<16x1xf32>
    %86 = arith.subf %85, %84 : vector<16x1xf32>
    %cst_34 = arith.constant 0.000000e+00 : f32
    %87 = vector.broadcast %cst_34 : f32 to vector<16x1xf32>
    %88 = arith.minimumf %86, %87 : vector<16x1xf32>
    %89 = math.absf %86 : vector<16x1xf32>
    %cst_35 = arith.constant 0.000000e+00 : f32
    %90 = vector.broadcast %cst_35 : f32 to vector<16x1xf32>
    %91 = arith.subf %90, %89 : vector<16x1xf32>
    %92 = math.exp %91 : vector<16x1xf32>
    %cst_36 = arith.constant 1.000000e+00 : f32
    %93 = vector.broadcast %cst_36 : f32 to vector<16x1xf32>
    %94 = arith.addf %93, %92 : vector<16x1xf32>
    %95 = math.log %94 : vector<16x1xf32>
    %96 = arith.subf %88, %95 : vector<16x1xf32>
    %97 = arith.mulf %96, %7 : vector<16x1xf32>
    %98 = vector.shape_cast %97 : vector<16x1xf32> to vector<1x16x1xf32>
    %cst_37 = arith.constant dense<0.000000e+00> : vector<1xf32>
    %99 = vector.multi_reduction <add>, %98, %cst_37 [1, 2] : vector<1x16x1xf32> to vector<1xf32>
    %100 = vector.shape_cast %99 : vector<1xf32> to vector<1x1x1xf32>
    %101 = vector.extract %100[0, 0, 0] : f32 from vector<1x1x1xf32>
    %102 = vector.broadcast %101 : f32 to vector<1x1xf32>
    %103 = arith.addf %78, %102 : vector<1x1xf32>
    %c0_38 = arith.constant 0 : index
    %c0_39 = arith.constant 0 : index
    %104 = vector.load %arg1[%c0_38, %c0_39] : memref<16x128xf32, #tpu.memory_space<vmem>>, vector<16x128xf32>
    %c3 = arith.constant 3 : index
    %c0_40 = arith.constant 0 : index
    %c0_41 = arith.constant 0 : index
    %105 = vector.load %arg3[%c3, %c0_40, %c0_41] : memref<16x16x128xf32, #tpu.memory_space<vmem>>, vector<1x16x128xf32>
    %106 = vector.shape_cast %105 : vector<1x16x128xf32> to vector<16x128xf32>
    %107 = arith.mulf %106, %104 : vector<16x128xf32>
    %cst_42 = arith.constant dense<0.000000e+00> : vector<16xf32>
    %108 = vector.multi_reduction <add>, %107, %cst_42 [1] : vector<16x128xf32> to vector<16xf32>
    %109 = vector.shape_cast %108 : vector<16xf32> to vector<16x1xf32>
    %cst_43 = arith.constant 0.000000e+00 : f32
    %110 = vector.broadcast %cst_43 : f32 to vector<16x1xf32>
    %111 = arith.subf %110, %109 : vector<16x1xf32>
    %cst_44 = arith.constant 0.000000e+00 : f32
    %112 = vector.broadcast %cst_44 : f32 to vector<16x1xf32>
    %113 = arith.minimumf %111, %112 : vector<16x1xf32>
    %114 = math.absf %111 : vector<16x1xf32>
    %cst_45 = arith.constant 0.000000e+00 : f32
    %115 = vector.broadcast %cst_45 : f32 to vector<16x1xf32>
    %116 = arith.subf %115, %114 : vector<16x1xf32>
    %117 = math.exp %116 : vector<16x1xf32>
    %cst_46 = arith.constant 1.000000e+00 : f32
    %118 = vector.broadcast %cst_46 : f32 to vector<16x1xf32>
    %119 = arith.addf %118, %117 : vector<16x1xf32>
    %120 = math.log %119 : vector<16x1xf32>
    %121 = arith.subf %113, %120 : vector<16x1xf32>
    %122 = arith.mulf %121, %7 : vector<16x1xf32>
    %123 = vector.shape_cast %122 : vector<16x1xf32> to vector<1x16x1xf32>
    %cst_47 = arith.constant dense<0.000000e+00> : vector<1xf32>
    %124 = vector.multi_reduction <add>, %123, %cst_47 [1, 2] : vector<1x16x1xf32> to vector<1xf32>
    %125 = vector.shape_cast %124 : vector<1xf32> to vector<1x1x1xf32>
    %126 = vector.extract %125[0, 0, 0] : f32 from vector<1x1x1xf32>
    %127 = vector.broadcast %126 : f32 to vector<1x1xf32>
    %128 = arith.addf %103, %127 : vector<1x1xf32>
    %c0_48 = arith.constant 0 : index
    %c0_49 = arith.constant 0 : index
    %129 = vector.load %arg1[%c0_48, %c0_49] : memref<16x128xf32, #tpu.memory_space<vmem>>, vector<16x128xf32>
    %c4 = arith.constant 4 : index
    %c0_50 = arith.constant 0 : index
    %c0_51 = arith.constant 0 : index
    %130 = vector.load %arg3[%c4, %c0_50, %c0_51] : memref<16x16x128xf32, #tpu.memory_space<vmem>>, vector<1x16x128xf32>
    %131 = vector.shape_cast %130 : vector<1x16x128xf32> to vector<16x128xf32>
    %132 = arith.mulf %131, %129 : vector<16x128xf32>
    %cst_52 = arith.constant dense<0.000000e+00> : vector<16xf32>
    %133 = vector.multi_reduction <add>, %132, %cst_52 [1] : vector<16x128xf32> to vector<16xf32>
    %134 = vector.shape_cast %133 : vector<16xf32> to vector<16x1xf32>
    %cst_53 = arith.constant 0.000000e+00 : f32
    %135 = vector.broadcast %cst_53 : f32 to vector<16x1xf32>
    %136 = arith.subf %135, %134 : vector<16x1xf32>
    %cst_54 = arith.constant 0.000000e+00 : f32
    %137 = vector.broadcast %cst_54 : f32 to vector<16x1xf32>
    %138 = arith.minimumf %136, %137 : vector<16x1xf32>
    %139 = math.absf %136 : vector<16x1xf32>
    %cst_55 = arith.constant 0.000000e+00 : f32
    %140 = vector.broadcast %cst_55 : f32 to vector<16x1xf32>
    %141 = arith.subf %140, %139 : vector<16x1xf32>
    %142 = math.exp %141 : vector<16x1xf32>
    %cst_56 = arith.constant 1.000000e+00 : f32
    %143 = vector.broadcast %cst_56 : f32 to vector<16x1xf32>
    %144 = arith.addf %143, %142 : vector<16x1xf32>
    %145 = math.log %144 : vector<16x1xf32>
    %146 = arith.subf %138, %145 : vector<16x1xf32>
    %147 = arith.mulf %146, %7 : vector<16x1xf32>
    %148 = vector.shape_cast %147 : vector<16x1xf32> to vector<1x16x1xf32>
    %cst_57 = arith.constant dense<0.000000e+00> : vector<1xf32>
    %149 = vector.multi_reduction <add>, %148, %cst_57 [1, 2] : vector<1x16x1xf32> to vector<1xf32>
    %150 = vector.shape_cast %149 : vector<1xf32> to vector<1x1x1xf32>
    %151 = vector.extract %150[0, 0, 0] : f32 from vector<1x1x1xf32>
    %152 = vector.broadcast %151 : f32 to vector<1x1xf32>
    %153 = arith.addf %128, %152 : vector<1x1xf32>
    %c0_58 = arith.constant 0 : index
    %c0_59 = arith.constant 0 : index
    %154 = vector.load %arg1[%c0_58, %c0_59] : memref<16x128xf32, #tpu.memory_space<vmem>>, vector<16x128xf32>
    %c5 = arith.constant 5 : index
    %c0_60 = arith.constant 0 : index
    %c0_61 = arith.constant 0 : index
    %155 = vector.load %arg3[%c5, %c0_60, %c0_61] : memref<16x16x128xf32, #tpu.memory_space<vmem>>, vector<1x16x128xf32>
    %156 = vector.shape_cast %155 : vector<1x16x128xf32> to vector<16x128xf32>
    %157 = arith.mulf %156, %154 : vector<16x128xf32>
    %cst_62 = arith.constant dense<0.000000e+00> : vector<16xf32>
    %158 = vector.multi_reduction <add>, %157, %cst_62 [1] : vector<16x128xf32> to vector<16xf32>
    %159 = vector.shape_cast %158 : vector<16xf32> to vector<16x1xf32>
    %cst_63 = arith.constant 0.000000e+00 : f32
    %160 = vector.broadcast %cst_63 : f32 to vector<16x1xf32>
    %161 = arith.subf %160, %159 : vector<16x1xf32>
    %cst_64 = arith.constant 0.000000e+00 : f32
    %162 = vector.broadcast %cst_64 : f32 to vector<16x1xf32>
    %163 = arith.minimumf %161, %162 : vector<16x1xf32>
    %164 = math.absf %161 : vector<16x1xf32>
    %cst_65 = arith.constant 0.000000e+00 : f32
    %165 = vector.broadcast %cst_65 : f32 to vector<16x1xf32>
    %166 = arith.subf %165, %164 : vector<16x1xf32>
    %167 = math.exp %166 : vector<16x1xf32>
    %cst_66 = arith.constant 1.000000e+00 : f32
    %168 = vector.broadcast %cst_66 : f32 to vector<16x1xf32>
    %169 = arith.addf %168, %167 : vector<16x1xf32>
    %170 = math.log %169 : vector<16x1xf32>
    %171 = arith.subf %163, %170 : vector<16x1xf32>
    %172 = arith.mulf %171, %7 : vector<16x1xf32>
    %173 = vector.shape_cast %172 : vector<16x1xf32> to vector<1x16x1xf32>
    %cst_67 = arith.constant dense<0.000000e+00> : vector<1xf32>
    %174 = vector.multi_reduction <add>, %173, %cst_67 [1, 2] : vector<1x16x1xf32> to vector<1xf32>
    %175 = vector.shape_cast %174 : vector<1xf32> to vector<1x1x1xf32>
    %176 = vector.extract %175[0, 0, 0] : f32 from vector<1x1x1xf32>
    %177 = vector.broadcast %176 : f32 to vector<1x1xf32>
    %178 = arith.addf %153, %177 : vector<1x1xf32>
    %c0_68 = arith.constant 0 : index
    %c0_69 = arith.constant 0 : index
    %179 = vector.load %arg1[%c0_68, %c0_69] : memref<16x128xf32, #tpu.memory_space<vmem>>, vector<16x128xf32>
    %c6 = arith.constant 6 : index
    %c0_70 = arith.constant 0 : index
    %c0_71 = arith.constant 0 : index
    %180 = vector.load %arg3[%c6, %c0_70, %c0_71] : memref<16x16x128xf32, #tpu.memory_space<vmem>>, vector<1x16x128xf32>
    %181 = vector.shape_cast %180 : vector<1x16x128xf32> to vector<16x128xf32>
    %182 = arith.mulf %181, %179 : vector<16x128xf32>
    %cst_72 = arith.constant dense<0.000000e+00> : vector<16xf32>
    %183 = vector.multi_reduction <add>, %182, %cst_72 [1] : vector<16x128xf32> to vector<16xf32>
    %184 = vector.shape_cast %183 : vector<16xf32> to vector<16x1xf32>
    %cst_73 = arith.constant 0.000000e+00 : f32
    %185 = vector.broadcast %cst_73 : f32 to vector<16x1xf32>
    %186 = arith.subf %185, %184 : vector<16x1xf32>
    %cst_74 = arith.constant 0.000000e+00 : f32
    %187 = vector.broadcast %cst_74 : f32 to vector<16x1xf32>
    %188 = arith.minimumf %186, %187 : vector<16x1xf32>
    %189 = math.absf %186 : vector<16x1xf32>
    %cst_75 = arith.constant 0.000000e+00 : f32
    %190 = vector.broadcast %cst_75 : f32 to vector<16x1xf32>
    %191 = arith.subf %190, %189 : vector<16x1xf32>
    %192 = math.exp %191 : vector<16x1xf32>
    %cst_76 = arith.constant 1.000000e+00 : f32
    %193 = vector.broadcast %cst_76 : f32 to vector<16x1xf32>
    %194 = arith.addf %193, %192 : vector<16x1xf32>
    %195 = math.log %194 : vector<16x1xf32>
    %196 = arith.subf %188, %195 : vector<16x1xf32>
    %197 = arith.mulf %196, %7 : vector<16x1xf32>
    %198 = vector.shape_cast %197 : vector<16x1xf32> to vector<1x16x1xf32>
    %cst_77 = arith.constant dense<0.000000e+00> : vector<1xf32>
    %199 = vector.multi_reduction <add>, %198, %cst_77 [1, 2] : vector<1x16x1xf32> to vector<1xf32>
    %200 = vector.shape_cast %199 : vector<1xf32> to vector<1x1x1xf32>
    %201 = vector.extract %200[0, 0, 0] : f32 from vector<1x1x1xf32>
    %202 = vector.broadcast %201 : f32 to vector<1x1xf32>
    %203 = arith.addf %178, %202 : vector<1x1xf32>
    %c0_78 = arith.constant 0 : index
    %c0_79 = arith.constant 0 : index
    %204 = vector.load %arg1[%c0_78, %c0_79] : memref<16x128xf32, #tpu.memory_space<vmem>>, vector<16x128xf32>
    %c7 = arith.constant 7 : index
    %c0_80 = arith.constant 0 : index
    %c0_81 = arith.constant 0 : index
    %205 = vector.load %arg3[%c7, %c0_80, %c0_81] : memref<16x16x128xf32, #tpu.memory_space<vmem>>, vector<1x16x128xf32>
    %206 = vector.shape_cast %205 : vector<1x16x128xf32> to vector<16x128xf32>
    %207 = arith.mulf %206, %204 : vector<16x128xf32>
    %cst_82 = arith.constant dense<0.000000e+00> : vector<16xf32>
    %208 = vector.multi_reduction <add>, %207, %cst_82 [1] : vector<16x128xf32> to vector<16xf32>
    %209 = vector.shape_cast %208 : vector<16xf32> to vector<16x1xf32>
    %cst_83 = arith.constant 0.000000e+00 : f32
    %210 = vector.broadcast %cst_83 : f32 to vector<16x1xf32>
    %211 = arith.subf %210, %209 : vector<16x1xf32>
    %cst_84 = arith.constant 0.000000e+00 : f32
    %212 = vector.broadcast %cst_84 : f32 to vector<16x1xf32>
    %213 = arith.minimumf %211, %212 : vector<16x1xf32>
    %214 = math.absf %211 : vector<16x1xf32>
    %cst_85 = arith.constant 0.000000e+00 : f32
    %215 = vector.broadcast %cst_85 : f32 to vector<16x1xf32>
    %216 = arith.subf %215, %214 : vector<16x1xf32>
    %217 = math.exp %216 : vector<16x1xf32>
    %cst_86 = arith.constant 1.000000e+00 : f32
    %218 = vector.broadcast %cst_86 : f32 to vector<16x1xf32>
    %219 = arith.addf %218, %217 : vector<16x1xf32>
    %220 = math.log %219 : vector<16x1xf32>
    %221 = arith.subf %213, %220 : vector<16x1xf32>
    %222 = arith.mulf %221, %7 : vector<16x1xf32>
    %223 = vector.shape_cast %222 : vector<16x1xf32> to vector<1x16x1xf32>
    %cst_87 = arith.constant dense<0.000000e+00> : vector<1xf32>
    %224 = vector.multi_reduction <add>, %223, %cst_87 [1, 2] : vector<1x16x1xf32> to vector<1xf32>
    %225 = vector.shape_cast %224 : vector<1xf32> to vector<1x1x1xf32>
    %226 = vector.extract %225[0, 0, 0] : f32 from vector<1x1x1xf32>
    %227 = vector.broadcast %226 : f32 to vector<1x1xf32>
    %228 = arith.addf %203, %227 : vector<1x1xf32>
    %c0_88 = arith.constant 0 : index
    %c0_89 = arith.constant 0 : index
    %229 = vector.load %arg1[%c0_88, %c0_89] : memref<16x128xf32, #tpu.memory_space<vmem>>, vector<16x128xf32>
    %c8 = arith.constant 8 : index
    %c0_90 = arith.constant 0 : index
    %c0_91 = arith.constant 0 : index
    %230 = vector.load %arg3[%c8, %c0_90, %c0_91] : memref<16x16x128xf32, #tpu.memory_space<vmem>>, vector<1x16x128xf32>
    %231 = vector.shape_cast %230 : vector<1x16x128xf32> to vector<16x128xf32>
    %232 = arith.mulf %231, %229 : vector<16x128xf32>
    %cst_92 = arith.constant dense<0.000000e+00> : vector<16xf32>
    %233 = vector.multi_reduction <add>, %232, %cst_92 [1] : vector<16x128xf32> to vector<16xf32>
    %234 = vector.shape_cast %233 : vector<16xf32> to vector<16x1xf32>
    %cst_93 = arith.constant 0.000000e+00 : f32
    %235 = vector.broadcast %cst_93 : f32 to vector<16x1xf32>
    %236 = arith.subf %235, %234 : vector<16x1xf32>
    %cst_94 = arith.constant 0.000000e+00 : f32
    %237 = vector.broadcast %cst_94 : f32 to vector<16x1xf32>
    %238 = arith.minimumf %236, %237 : vector<16x1xf32>
    %239 = math.absf %236 : vector<16x1xf32>
    %cst_95 = arith.constant 0.000000e+00 : f32
    %240 = vector.broadcast %cst_95 : f32 to vector<16x1xf32>
    %241 = arith.subf %240, %239 : vector<16x1xf32>
    %242 = math.exp %241 : vector<16x1xf32>
    %cst_96 = arith.constant 1.000000e+00 : f32
    %243 = vector.broadcast %cst_96 : f32 to vector<16x1xf32>
    %244 = arith.addf %243, %242 : vector<16x1xf32>
    %245 = math.log %244 : vector<16x1xf32>
    %246 = arith.subf %238, %245 : vector<16x1xf32>
    %247 = arith.mulf %246, %7 : vector<16x1xf32>
    %248 = vector.shape_cast %247 : vector<16x1xf32> to vector<1x16x1xf32>
    %cst_97 = arith.constant dense<0.000000e+00> : vector<1xf32>
    %249 = vector.multi_reduction <add>, %248, %cst_97 [1, 2] : vector<1x16x1xf32> to vector<1xf32>
    %250 = vector.shape_cast %249 : vector<1xf32> to vector<1x1x1xf32>
    %251 = vector.extract %250[0, 0, 0] : f32 from vector<1x1x1xf32>
    %252 = vector.broadcast %251 : f32 to vector<1x1xf32>
    %253 = arith.addf %228, %252 : vector<1x1xf32>
    %c0_98 = arith.constant 0 : index
    %c0_99 = arith.constant 0 : index
    %254 = vector.load %arg1[%c0_98, %c0_99] : memref<16x128xf32, #tpu.memory_space<vmem>>, vector<16x128xf32>
    %c9 = arith.constant 9 : index
    %c0_100 = arith.constant 0 : index
    %c0_101 = arith.constant 0 : index
    %255 = vector.load %arg3[%c9, %c0_100, %c0_101] : memref<16x16x128xf32, #tpu.memory_space<vmem>>, vector<1x16x128xf32>
    %256 = vector.shape_cast %255 : vector<1x16x128xf32> to vector<16x128xf32>
    %257 = arith.mulf %256, %254 : vector<16x128xf32>
    %cst_102 = arith.constant dense<0.000000e+00> : vector<16xf32>
    %258 = vector.multi_reduction <add>, %257, %cst_102 [1] : vector<16x128xf32> to vector<16xf32>
    %259 = vector.shape_cast %258 : vector<16xf32> to vector<16x1xf32>
    %cst_103 = arith.constant 0.000000e+00 : f32
    %260 = vector.broadcast %cst_103 : f32 to vector<16x1xf32>
    %261 = arith.subf %260, %259 : vector<16x1xf32>
    %cst_104 = arith.constant 0.000000e+00 : f32
    %262 = vector.broadcast %cst_104 : f32 to vector<16x1xf32>
    %263 = arith.minimumf %261, %262 : vector<16x1xf32>
    %264 = math.absf %261 : vector<16x1xf32>
    %cst_105 = arith.constant 0.000000e+00 : f32
    %265 = vector.broadcast %cst_105 : f32 to vector<16x1xf32>
    %266 = arith.subf %265, %264 : vector<16x1xf32>
    %267 = math.exp %266 : vector<16x1xf32>
    %cst_106 = arith.constant 1.000000e+00 : f32
    %268 = vector.broadcast %cst_106 : f32 to vector<16x1xf32>
    %269 = arith.addf %268, %267 : vector<16x1xf32>
    %270 = math.log %269 : vector<16x1xf32>
    %271 = arith.subf %263, %270 : vector<16x1xf32>
    %272 = arith.mulf %271, %7 : vector<16x1xf32>
    %273 = vector.shape_cast %272 : vector<16x1xf32> to vector<1x16x1xf32>
    %cst_107 = arith.constant dense<0.000000e+00> : vector<1xf32>
    %274 = vector.multi_reduction <add>, %273, %cst_107 [1, 2] : vector<1x16x1xf32> to vector<1xf32>
    %275 = vector.shape_cast %274 : vector<1xf32> to vector<1x1x1xf32>
    %276 = vector.extract %275[0, 0, 0] : f32 from vector<1x1x1xf32>
    %277 = vector.broadcast %276 : f32 to vector<1x1xf32>
    %278 = arith.addf %253, %277 : vector<1x1xf32>
    %c0_108 = arith.constant 0 : index
    %c0_109 = arith.constant 0 : index
    %279 = vector.load %arg1[%c0_108, %c0_109] : memref<16x128xf32, #tpu.memory_space<vmem>>, vector<16x128xf32>
    %c10 = arith.constant 10 : index
    %c0_110 = arith.constant 0 : index
    %c0_111 = arith.constant 0 : index
    %280 = vector.load %arg3[%c10, %c0_110, %c0_111] : memref<16x16x128xf32, #tpu.memory_space<vmem>>, vector<1x16x128xf32>
    %281 = vector.shape_cast %280 : vector<1x16x128xf32> to vector<16x128xf32>
    %282 = arith.mulf %281, %279 : vector<16x128xf32>
    %cst_112 = arith.constant dense<0.000000e+00> : vector<16xf32>
    %283 = vector.multi_reduction <add>, %282, %cst_112 [1] : vector<16x128xf32> to vector<16xf32>
    %284 = vector.shape_cast %283 : vector<16xf32> to vector<16x1xf32>
    %cst_113 = arith.constant 0.000000e+00 : f32
    %285 = vector.broadcast %cst_113 : f32 to vector<16x1xf32>
    %286 = arith.subf %285, %284 : vector<16x1xf32>
    %cst_114 = arith.constant 0.000000e+00 : f32
    %287 = vector.broadcast %cst_114 : f32 to vector<16x1xf32>
    %288 = arith.minimumf %286, %287 : vector<16x1xf32>
    %289 = math.absf %286 : vector<16x1xf32>
    %cst_115 = arith.constant 0.000000e+00 : f32
    %290 = vector.broadcast %cst_115 : f32 to vector<16x1xf32>
    %291 = arith.subf %290, %289 : vector<16x1xf32>
    %292 = math.exp %291 : vector<16x1xf32>
    %cst_116 = arith.constant 1.000000e+00 : f32
    %293 = vector.broadcast %cst_116 : f32 to vector<16x1xf32>
    %294 = arith.addf %293, %292 : vector<16x1xf32>
    %295 = math.log %294 : vector<16x1xf32>
    %296 = arith.subf %288, %295 : vector<16x1xf32>
    %297 = arith.mulf %296, %7 : vector<16x1xf32>
    %298 = vector.shape_cast %297 : vector<16x1xf32> to vector<1x16x1xf32>
    %cst_117 = arith.constant dense<0.000000e+00> : vector<1xf32>
    %299 = vector.multi_reduction <add>, %298, %cst_117 [1, 2] : vector<1x16x1xf32> to vector<1xf32>
    %300 = vector.shape_cast %299 : vector<1xf32> to vector<1x1x1xf32>
    %301 = vector.extract %300[0, 0, 0] : f32 from vector<1x1x1xf32>
    %302 = vector.broadcast %301 : f32 to vector<1x1xf32>
    %303 = arith.addf %278, %302 : vector<1x1xf32>
    %c0_118 = arith.constant 0 : index
    %c0_119 = arith.constant 0 : index
    %304 = vector.load %arg1[%c0_118, %c0_119] : memref<16x128xf32, #tpu.memory_space<vmem>>, vector<16x128xf32>
    %c11 = arith.constant 11 : index
    %c0_120 = arith.constant 0 : index
    %c0_121 = arith.constant 0 : index
    %305 = vector.load %arg3[%c11, %c0_120, %c0_121] : memref<16x16x128xf32, #tpu.memory_space<vmem>>, vector<1x16x128xf32>
    %306 = vector.shape_cast %305 : vector<1x16x128xf32> to vector<16x128xf32>
    %307 = arith.mulf %306, %304 : vector<16x128xf32>
    %cst_122 = arith.constant dense<0.000000e+00> : vector<16xf32>
    %308 = vector.multi_reduction <add>, %307, %cst_122 [1] : vector<16x128xf32> to vector<16xf32>
    %309 = vector.shape_cast %308 : vector<16xf32> to vector<16x1xf32>
    %cst_123 = arith.constant 0.000000e+00 : f32
    %310 = vector.broadcast %cst_123 : f32 to vector<16x1xf32>
    %311 = arith.subf %310, %309 : vector<16x1xf32>
    %cst_124 = arith.constant 0.000000e+00 : f32
    %312 = vector.broadcast %cst_124 : f32 to vector<16x1xf32>
    %313 = arith.minimumf %311, %312 : vector<16x1xf32>
    %314 = math.absf %311 : vector<16x1xf32>
    %cst_125 = arith.constant 0.000000e+00 : f32
    %315 = vector.broadcast %cst_125 : f32 to vector<16x1xf32>
    %316 = arith.subf %315, %314 : vector<16x1xf32>
    %317 = math.exp %316 : vector<16x1xf32>
    %cst_126 = arith.constant 1.000000e+00 : f32
    %318 = vector.broadcast %cst_126 : f32 to vector<16x1xf32>
    %319 = arith.addf %318, %317 : vector<16x1xf32>
    %320 = math.log %319 : vector<16x1xf32>
    %321 = arith.subf %313, %320 : vector<16x1xf32>
    %322 = arith.mulf %321, %7 : vector<16x1xf32>
    %323 = vector.shape_cast %322 : vector<16x1xf32> to vector<1x16x1xf32>
    %cst_127 = arith.constant dense<0.000000e+00> : vector<1xf32>
    %324 = vector.multi_reduction <add>, %323, %cst_127 [1, 2] : vector<1x16x1xf32> to vector<1xf32>
    %325 = vector.shape_cast %324 : vector<1xf32> to vector<1x1x1xf32>
    %326 = vector.extract %325[0, 0, 0] : f32 from vector<1x1x1xf32>
    %327 = vector.broadcast %326 : f32 to vector<1x1xf32>
    %328 = arith.addf %303, %327 : vector<1x1xf32>
    %c0_128 = arith.constant 0 : index
    %c0_129 = arith.constant 0 : index
    %329 = vector.load %arg1[%c0_128, %c0_129] : memref<16x128xf32, #tpu.memory_space<vmem>>, vector<16x128xf32>
    %c12 = arith.constant 12 : index
    %c0_130 = arith.constant 0 : index
    %c0_131 = arith.constant 0 : index
    %330 = vector.load %arg3[%c12, %c0_130, %c0_131] : memref<16x16x128xf32, #tpu.memory_space<vmem>>, vector<1x16x128xf32>
    %331 = vector.shape_cast %330 : vector<1x16x128xf32> to vector<16x128xf32>
    %332 = arith.mulf %331, %329 : vector<16x128xf32>
    %cst_132 = arith.constant dense<0.000000e+00> : vector<16xf32>
    %333 = vector.multi_reduction <add>, %332, %cst_132 [1] : vector<16x128xf32> to vector<16xf32>
    %334 = vector.shape_cast %333 : vector<16xf32> to vector<16x1xf32>
    %cst_133 = arith.constant 0.000000e+00 : f32
    %335 = vector.broadcast %cst_133 : f32 to vector<16x1xf32>
    %336 = arith.subf %335, %334 : vector<16x1xf32>
    %cst_134 = arith.constant 0.000000e+00 : f32
    %337 = vector.broadcast %cst_134 : f32 to vector<16x1xf32>
    %338 = arith.minimumf %336, %337 : vector<16x1xf32>
    %339 = math.absf %336 : vector<16x1xf32>
    %cst_135 = arith.constant 0.000000e+00 : f32
    %340 = vector.broadcast %cst_135 : f32 to vector<16x1xf32>
    %341 = arith.subf %340, %339 : vector<16x1xf32>
    %342 = math.exp %341 : vector<16x1xf32>
    %cst_136 = arith.constant 1.000000e+00 : f32
    %343 = vector.broadcast %cst_136 : f32 to vector<16x1xf32>
    %344 = arith.addf %343, %342 : vector<16x1xf32>
    %345 = math.log %344 : vector<16x1xf32>
    %346 = arith.subf %338, %345 : vector<16x1xf32>
    %347 = arith.mulf %346, %7 : vector<16x1xf32>
    %348 = vector.shape_cast %347 : vector<16x1xf32> to vector<1x16x1xf32>
    %cst_137 = arith.constant dense<0.000000e+00> : vector<1xf32>
    %349 = vector.multi_reduction <add>, %348, %cst_137 [1, 2] : vector<1x16x1xf32> to vector<1xf32>
    %350 = vector.shape_cast %349 : vector<1xf32> to vector<1x1x1xf32>
    %351 = vector.extract %350[0, 0, 0] : f32 from vector<1x1x1xf32>
    %352 = vector.broadcast %351 : f32 to vector<1x1xf32>
    %353 = arith.addf %328, %352 : vector<1x1xf32>
    %c0_138 = arith.constant 0 : index
    %c0_139 = arith.constant 0 : index
    %354 = vector.load %arg1[%c0_138, %c0_139] : memref<16x128xf32, #tpu.memory_space<vmem>>, vector<16x128xf32>
    %c13 = arith.constant 13 : index
    %c0_140 = arith.constant 0 : index
    %c0_141 = arith.constant 0 : index
    %355 = vector.load %arg3[%c13, %c0_140, %c0_141] : memref<16x16x128xf32, #tpu.memory_space<vmem>>, vector<1x16x128xf32>
    %356 = vector.shape_cast %355 : vector<1x16x128xf32> to vector<16x128xf32>
    %357 = arith.mulf %356, %354 : vector<16x128xf32>
    %cst_142 = arith.constant dense<0.000000e+00> : vector<16xf32>
    %358 = vector.multi_reduction <add>, %357, %cst_142 [1] : vector<16x128xf32> to vector<16xf32>
    %359 = vector.shape_cast %358 : vector<16xf32> to vector<16x1xf32>
    %cst_143 = arith.constant 0.000000e+00 : f32
    %360 = vector.broadcast %cst_143 : f32 to vector<16x1xf32>
    %361 = arith.subf %360, %359 : vector<16x1xf32>
    %cst_144 = arith.constant 0.000000e+00 : f32
    %362 = vector.broadcast %cst_144 : f32 to vector<16x1xf32>
    %363 = arith.minimumf %361, %362 : vector<16x1xf32>
    %364 = math.absf %361 : vector<16x1xf32>
    %cst_145 = arith.constant 0.000000e+00 : f32
    %365 = vector.broadcast %cst_145 : f32 to vector<16x1xf32>
    %366 = arith.subf %365, %364 : vector<16x1xf32>
    %367 = math.exp %366 : vector<16x1xf32>
    %cst_146 = arith.constant 1.000000e+00 : f32
    %368 = vector.broadcast %cst_146 : f32 to vector<16x1xf32>
    %369 = arith.addf %368, %367 : vector<16x1xf32>
    %370 = math.log %369 : vector<16x1xf32>
    %371 = arith.subf %363, %370 : vector<16x1xf32>
    %372 = arith.mulf %371, %7 : vector<16x1xf32>
    %373 = vector.shape_cast %372 : vector<16x1xf32> to vector<1x16x1xf32>
    %cst_147 = arith.constant dense<0.000000e+00> : vector<1xf32>
    %374 = vector.multi_reduction <add>, %373, %cst_147 [1, 2] : vector<1x16x1xf32> to vector<1xf32>
    %375 = vector.shape_cast %374 : vector<1xf32> to vector<1x1x1xf32>
    %376 = vector.extract %375[0, 0, 0] : f32 from vector<1x1x1xf32>
    %377 = vector.broadcast %376 : f32 to vector<1x1xf32>
    %378 = arith.addf %353, %377 : vector<1x1xf32>
    %c0_148 = arith.constant 0 : index
    %c0_149 = arith.constant 0 : index
    %379 = vector.load %arg1[%c0_148, %c0_149] : memref<16x128xf32, #tpu.memory_space<vmem>>, vector<16x128xf32>
    %c14 = arith.constant 14 : index
    %c0_150 = arith.constant 0 : index
    %c0_151 = arith.constant 0 : index
    %380 = vector.load %arg3[%c14, %c0_150, %c0_151] : memref<16x16x128xf32, #tpu.memory_space<vmem>>, vector<1x16x128xf32>
    %381 = vector.shape_cast %380 : vector<1x16x128xf32> to vector<16x128xf32>
    %382 = arith.mulf %381, %379 : vector<16x128xf32>
    %cst_152 = arith.constant dense<0.000000e+00> : vector<16xf32>
    %383 = vector.multi_reduction <add>, %382, %cst_152 [1] : vector<16x128xf32> to vector<16xf32>
    %384 = vector.shape_cast %383 : vector<16xf32> to vector<16x1xf32>
    %cst_153 = arith.constant 0.000000e+00 : f32
    %385 = vector.broadcast %cst_153 : f32 to vector<16x1xf32>
    %386 = arith.subf %385, %384 : vector<16x1xf32>
    %cst_154 = arith.constant 0.000000e+00 : f32
    %387 = vector.broadcast %cst_154 : f32 to vector<16x1xf32>
    %388 = arith.minimumf %386, %387 : vector<16x1xf32>
    %389 = math.absf %386 : vector<16x1xf32>
    %cst_155 = arith.constant 0.000000e+00 : f32
    %390 = vector.broadcast %cst_155 : f32 to vector<16x1xf32>
    %391 = arith.subf %390, %389 : vector<16x1xf32>
    %392 = math.exp %391 : vector<16x1xf32>
    %cst_156 = arith.constant 1.000000e+00 : f32
    %393 = vector.broadcast %cst_156 : f32 to vector<16x1xf32>
    %394 = arith.addf %393, %392 : vector<16x1xf32>
    %395 = math.log %394 : vector<16x1xf32>
    %396 = arith.subf %388, %395 : vector<16x1xf32>
    %397 = arith.mulf %396, %7 : vector<16x1xf32>
    %398 = vector.shape_cast %397 : vector<16x1xf32> to vector<1x16x1xf32>
    %cst_157 = arith.constant dense<0.000000e+00> : vector<1xf32>
    %399 = vector.multi_reduction <add>, %398, %cst_157 [1, 2] : vector<1x16x1xf32> to vector<1xf32>
    %400 = vector.shape_cast %399 : vector<1xf32> to vector<1x1x1xf32>
    %401 = vector.extract %400[0, 0, 0] : f32 from vector<1x1x1xf32>
    %402 = vector.broadcast %401 : f32 to vector<1x1xf32>
    %403 = arith.addf %378, %402 : vector<1x1xf32>
    %c0_158 = arith.constant 0 : index
    %c0_159 = arith.constant 0 : index
    %404 = vector.load %arg1[%c0_158, %c0_159] : memref<16x128xf32, #tpu.memory_space<vmem>>, vector<16x128xf32>
    %c15 = arith.constant 15 : index
    %c0_160 = arith.constant 0 : index
    %c0_161 = arith.constant 0 : index
    %405 = vector.load %arg3[%c15, %c0_160, %c0_161] : memref<16x16x128xf32, #tpu.memory_space<vmem>>, vector<1x16x128xf32>
    %406 = vector.shape_cast %405 : vector<1x16x128xf32> to vector<16x128xf32>
    %407 = arith.mulf %406, %404 : vector<16x128xf32>
    %cst_162 = arith.constant dense<0.000000e+00> : vector<16xf32>
    %408 = vector.multi_reduction <add>, %407, %cst_162 [1] : vector<16x128xf32> to vector<16xf32>
    %409 = vector.shape_cast %408 : vector<16xf32> to vector<16x1xf32>
    %cst_163 = arith.constant 0.000000e+00 : f32
    %410 = vector.broadcast %cst_163 : f32 to vector<16x1xf32>
    %411 = arith.subf %410, %409 : vector<16x1xf32>
    %cst_164 = arith.constant 0.000000e+00 : f32
    %412 = vector.broadcast %cst_164 : f32 to vector<16x1xf32>
    %413 = arith.minimumf %411, %412 : vector<16x1xf32>
    %414 = math.absf %411 : vector<16x1xf32>
    %cst_165 = arith.constant 0.000000e+00 : f32
    %415 = vector.broadcast %cst_165 : f32 to vector<16x1xf32>
    %416 = arith.subf %415, %414 : vector<16x1xf32>
    %417 = math.exp %416 : vector<16x1xf32>
    %cst_166 = arith.constant 1.000000e+00 : f32
    %418 = vector.broadcast %cst_166 : f32 to vector<16x1xf32>
    %419 = arith.addf %418, %417 : vector<16x1xf32>
    %420 = math.log %419 : vector<16x1xf32>
    %421 = arith.subf %413, %420 : vector<16x1xf32>
    %422 = arith.mulf %421, %7 : vector<16x1xf32>
    %423 = vector.shape_cast %422 : vector<16x1xf32> to vector<1x16x1xf32>
    %cst_167 = arith.constant dense<0.000000e+00> : vector<1xf32>
    %424 = vector.multi_reduction <add>, %423, %cst_167 [1, 2] : vector<1x16x1xf32> to vector<1xf32>
    %425 = vector.shape_cast %424 : vector<1xf32> to vector<1x1x1xf32>
    %426 = vector.extract %425[0, 0, 0] : f32 from vector<1x1x1xf32>
    %427 = vector.broadcast %426 : f32 to vector<1x1xf32>
    %428 = arith.addf %403, %427 : vector<1x1xf32>
    %429 = vector.shape_cast %428 : vector<1x1xf32> to vector<1x1x1xf32>
    %430 = vector.shape_cast %429 : vector<1x1x1xf32> to vector<1x1x1xf32>
    %431 = vector.broadcast %430 : vector<1x1x1xf32> to vector<1x8x128xf32>
    %c0_168 = arith.constant 0 : index
    %c0_169 = arith.constant 0 : index
    %c0_170 = arith.constant 0 : index
    %432 = vector.load %arg4[%c0_168, %c0_169, %c0_170] : memref<1x8x128xf32, #tpu.memory_space<vmem>>, vector<1x8x128xf32>
    tpu.vector_store %arg4[%c0_168, %c0_169, %c0_170], %431 {strides = array<i32>} : memref<1x8x128xf32, #tpu.memory_space<vmem>>, vector<1x8x128xf32>,
    return
  }
  func.func @transform_0(%arg0: i32) -> (i32, i32) {
    %c0_i32 = arith.constant 0 : i32
    %c0_i32_0 = arith.constant 0 : i32
    return %arg0, %c0_i32 : i32, i32
  }
  func.func @transform_1(%arg0: i32) -> (i32, i32) {
    %c0_i32 = arith.constant 0 : i32
    %c0_i32_0 = arith.constant 0 : i32
    return %arg0, %c0_i32 : i32, i32
  }
  func.func @transform_2(%arg0: i32) -> (i32, i32, i32) {
    %c0_i32 = arith.constant 0 : i32
    %c0_i32_0 = arith.constant 0 : i32
    %c0_i32_1 = arith.constant 0 : i32
    return %c0_i32, %arg0, %c0_i32_0 : i32, i32, i32
  }
  func.func @transform_3(%arg0: i32) -> (i32, i32, i32) {
    %c0_i32 = arith.constant 0 : i32
    %c0_i32_0 = arith.constant 0 : i32
    %c0_i32_1 = arith.constant 0 : i32
    return %arg0, %c0_i32, %c0_i32_0 : i32, i32, i32
  }
}

</mosaic_0001>

<llo_original>
// kernel: skipgram_forward.1
$region0: #{skipgram_forward.1}
  #allocation0 [shape = 'u32[]', space=smem, size = 0x4, offset = 0x4, fixed_abs, tag = 'smem constant byte address 0x4 - core index']
  #allocation1 [shape = 'u32[72,128]{1,0:T(1,128)}', space=vmem, size = 0x9000, scoped, tag = 'internal scratch']
  %s0 = inlined_call_operand.vmem [shape: f32[16,128], index: 0, kind: input, shape index: {}]
  %s1 = inlined_call_operand.vmem [shape: f32[16,128], index: 1, kind: input, shape index: {}]
  %s2 = inlined_call_operand.vmem [shape: f32[16,16,128], index: 2, kind: input, shape index: {}]
  %s3 = inlined_call_operand.vmem [shape: f32[1,8,128], index: 3, kind: output, shape index: {}]
  %s4 = sld [smem:[#allocation0]]
  $region22: #{skipgram_forward.1} parent=0
    _
  %s6 = ssub.s32 1, %s4
  %s7 = scalar_select 0, %s6, %s4
  // Predicated region
  $region2: #{skipgram_forward.1} parent=0 // pred_check
    _
  $region3: #{skipgram_forward.1} parent=0 // pred_check_branch
    %9 = sbr.rel (0) target = $region5
  $region4: #{skipgram_forward.1} parent=0 // pred_region
    _
  $region5: #{skipgram_forward.1} parent=0 // pred_fallthru
    _
  // Predicated region
  $region6: #{skipgram_forward.1} parent=0 // pred_check
    _
  $region7: #{skipgram_forward.1} parent=0 // pred_check_branch
    %11 = sbr.rel (0) target = $region9
  $region8: #{skipgram_forward.1} parent=0 // pred_region
    _
  $region9: #{skipgram_forward.1} parent=0 // pred_fallthru
    _
  // Predicated region
  $region10: #{skipgram_forward.1} parent=0 // pred_check
    _
  $region11: #{skipgram_forward.1} parent=0 // pred_check_branch
    %13 = sbr.rel (0) target = $region13
  $region12: #{skipgram_forward.1} parent=0 // pred_region
    _
  $region13: #{skipgram_forward.1} parent=0 // pred_fallthru
    _
  %s14 = smul.u32 0, 16
  %v15 = vlaneseq
  %v16 = vshrl.u32 %v15, 7
  %v17 = vadd.s32 %v16, 8
  %v18 = vstv %s14
  %v19 = vadd.s32 %v18, %v16
  %v20 = vadd.s32 %v18, %v17
  %vm21 = vcmp.lt.s32.totalorder %v19, 10
  %vm22 = vcmp.lt.s32.totalorder %v20, 10
  %v23 = vsel %vm21, 1, 0
  %v24 = vsel %vm22, 1, 0
  %v25 = vcvt.s32.f32 %v23
  %v26 = vcvt.s32.f32 %v24
  %v27 = vld [vmem:[%s0] sm:$0xff]
  %v28 = vld [vmem:[%s0 + $0x8] sm:$0xff]
  %v29 = vld [vmem:[%s1] sm:$0xff]
  %v30 = vld [vmem:[%s1 + $0x8] sm:$0xff]
  %v31 = vmul.f32 %v29, %v27
  %v32 = vmul.f32 %v30, %v28
  %33 = vadd.xlane.f32.xlu0 %v31
  %v34 = vpop.xlane.xlu0 %33
  %35 = vadd.xlane.f32.xlu0 %v32
  %v36 = vpop.xlane.xlu0 %35
  %v37 = vmin.f32 %v34, 0.0
  %v38 = vmin.f32 %v36, 0.0
  %v39 = vand.u32 2147483647, %v34
  %v40 = vand.u32 2147483647, %v36
  %v41 = vsub.f32 0.0, %v39
  %v42 = vsub.f32 0.0, %v40
  %v43 = vmul.f32 %v41, 1.442695
  %v44 = vpow.pop %v43
  %v45 = vmul.f32 %v42, 1.442695
  %v46 = vpow.pop %v45
  %v47 = vadd.f32 %v44, 1.0
  %v48 = vadd.f32 %v46, 1.0
  %v49 = vlog2.pop %v47
  %v50 = vmul.f32 %v49, 0.6931472
  %v51 = vlog2.pop %v48
  %v52 = vmul.f32 %v51, 0.6931472
  %v53 = vsub.f32 %v37, %v50
  %v54 = vsub.f32 %v38, %v52
  %v55 = vmul.f32 %v53, %v25
  %v56 = vmul.f32 %v54, %v26
  %vm57 = vcmask 7168
  %v58 = vsel %vm57, %v55, 0.0
  %v59 = vsel %vm57, %v56, 0.0
  %v60 = vadd.f32 %v58, %v59
  %61 = vadd.xlane.f32.xlu0 %v60
  %v62 = vpop.xlane.xlu0 %61
  %v63 = vrot.slane %v62, 4
  %v64 = vadd.f32 %v62, %v63
  %v65 = vrot.slane %v64, 2
  %v66 = vadd.f32 %v64, %v65
  %v67 = vrot.slane %v66, 1
  %v68 = vadd.f32 %v66, %v67
  %s69 = vtos %v68
  %v70 = vstv %s69
  %v71 = vld [vmem:[%s2] sm:$0xff]
  %v72 = vld [vmem:[%s2 + $0x8] sm:$0xff]
  %v73 = vmul.f32 %v71, %v27
  %v74 = vmul.f32 %v72, %v28
  %75 = vadd.xlane.f32.xlu0 %v73
  %v76 = vpop.xlane.xlu0 %75
  %77 = vadd.xlane.f32.xlu0 %v74
  %v78 = vpop.xlane.xlu0 %77
  %v79 = vsub.f32 0.0, %v76
  %v80 = vsub.f32 0.0, %v78
  %v81 = vmin.f32 %v79, 0.0
  %v82 = vmin.f32 %v80, 0.0
  %v83 = vand.u32 2147483647, %v79
  %v84 = vand.u32 2147483647, %v80
  %v85 = vsub.f32 0.0, %v83
  %v86 = vsub.f32 0.0, %v84
  %v87 = vmul.f32 %v85, 1.442695
  %v88 = vpow.pop %v87
  %v89 = vmul.f32 %v86, 1.442695
  %v90 = vpow.pop %v89
  %v91 = vadd.f32 %v88, 1.0
  %v92 = vadd.f32 %v90, 1.0
  %v93 = vlog2.pop %v91
  %v94 = vmul.f32 %v93, 0.6931472
  %v95 = vlog2.pop %v92
  %v96 = vmul.f32 %v95, 0.6931472
  %v97 = vsub.f32 %v81, %v94
  %v98 = vsub.f32 %v82, %v96
  %v99 = vmul.f32 %v97, %v25
  %v100 = vmul.f32 %v98, %v26
  %v101 = vsel %vm57, %v99, 0.0
  %v102 = vsel %vm57, %v100, 0.0
  %v103 = vadd.f32 %v101, %v102
  %104 = vadd.xlane.f32.xlu0 %v103
  %v105 = vpop.xlane.xlu0 %104
  %v106 = vrot.slane %v105, 4
  %v107 = vadd.f32 %v105, %v106
  %v108 = vrot.slane %v107, 2
  %v109 = vadd.f32 %v107, %v108
  %v110 = vrot.slane %v109, 1
  %v111 = vadd.f32 %v109, %v110
  %s112 = vtos %v111
  %v113 = vstv %s112
  %v114 = vadd.f32 %v70, %v113
  %s115 = scalar_lea.vmem %s2, 16
  %v116 = vld [vmem:[%s115] sm:$0xff]
  %v117 = vld [vmem:[%s115 + $0x8] sm:$0xff]
  %v118 = vmul.f32 %v116, %v27
  %v119 = vmul.f32 %v117, %v28
  %120 = vadd.xlane.f32.xlu0 %v118
  %v121 = vpop.xlane.xlu0 %120
  %122 = vadd.xlane.f32.xlu0 %v119
  %v123 = vpop.xlane.xlu0 %122
  %v124 = vsub.f32 0.0, %v121
  %v125 = vsub.f32 0.0, %v123
  %v126 = vmin.f32 %v124, 0.0
  %v127 = vmin.f32 %v125, 0.0
  %v128 = vand.u32 2147483647, %v124
  %v129 = vand.u32 2147483647, %v125
  %v130 = vsub.f32 0.0, %v128
  %v131 = vsub.f32 0.0, %v129
  %v132 = vmul.f32 %v130, 1.442695
  %v133 = vpow.pop %v132
  %v134 = vmul.f32 %v131, 1.442695
  %v135 = vpow.pop %v134
  %v136 = vadd.f32 %v133, 1.0
  %v137 = vadd.f32 %v135, 1.0
  %v138 = vlog2.pop %v136
  %v139 = vmul.f32 %v138, 0.6931472
  %v140 = vlog2.pop %v137
  %v141 = vmul.f32 %v140, 0.6931472
  %v142 = vsub.f32 %v126, %v139
  %v143 = vsub.f32 %v127, %v141
  %v144 = vmul.f32 %v142, %v25
  %v145 = vmul.f32 %v143, %v26
  %v146 = vsel %vm57, %v144, 0.0
  %v147 = vsel %vm57, %v145, 0.0
  %v148 = vadd.f32 %v146, %v147
  %149 = vadd.xlane.f32.xlu0 %v148
  %v150 = vpop.xlane.xlu0 %149
  %v151 = vrot.slane %v150, 4
  %v152 = vadd.f32 %v150, %v151
  %v153 = vrot.slane %v152, 2
  %v154 = vadd.f32 %v152, %v153
  %v155 = vrot.slane %v154, 1
  %v156 = vadd.f32 %v154, %v155
  %s157 = vtos %v156
  %v158 = vstv %s157
  %v159 = vadd.f32 %v114, %v158
  %s160 = scalar_lea.vmem %s2, 32
  %v161 = vld [vmem:[%s160] sm:$0xff]
  %v162 = vld [vmem:[%s160 + $0x8] sm:$0xff]
  %v163 = vmul.f32 %v161, %v27
  %v164 = vmul.f32 %v162, %v28
  %165 = vadd.xlane.f32.xlu0 %v163
  %v166 = vpop.xlane.xlu0 %165
  %167 = vadd.xlane.f32.xlu0 %v164
  %v168 = vpop.xlane.xlu0 %167
  %v169 = vsub.f32 0.0, %v166
  %v170 = vsub.f32 0.0, %v168
  %v171 = vmin.f32 %v169, 0.0
  %v172 = vmin.f32 %v170, 0.0
  %v173 = vand.u32 2147483647, %v169
  %v174 = vand.u32 2147483647, %v170
  %v175 = vsub.f32 0.0, %v173
  %v176 = vsub.f32 0.0, %v174
  %v177 = vmul.f32 %v175, 1.442695
  %v178 = vpow.pop %v177
  %v179 = vmul.f32 %v176, 1.442695
  %v180 = vpow.pop %v179
  %v181 = vadd.f32 %v178, 1.0
  %v182 = vadd.f32 %v180, 1.0
  %v183 = vlog2.pop %v181
  %v184 = vmul.f32 %v183, 0.6931472
  %v185 = vlog2.pop %v182
  %v186 = vmul.f32 %v185, 0.6931472
  %v187 = vsub.f32 %v171, %v184
  %v188 = vsub.f32 %v172, %v186
  %v189 = vmul.f32 %v187, %v25
  %v190 = vmul.f32 %v188, %v26
  %v191 = vsel %vm57, %v189, 0.0
  %v192 = vsel %vm57, %v190, 0.0
  %v193 = vadd.f32 %v191, %v192
  %194 = vadd.xlane.f32.xlu0 %v193
  %v195 = vpop.xlane.xlu0 %194
  %v196 = vrot.slane %v195, 4
  %v197 = vadd.f32 %v195, %v196
  %v198 = vrot.slane %v197, 2
  %v199 = vadd.f32 %v197, %v198
  %v200 = vrot.slane %v199, 1
  %v201 = vadd.f32 %v199, %v200
  %s202 = vtos %v201
  %v203 = vstv %s202
  %v204 = vadd.f32 %v159, %v203
  %s205 = scalar_lea.vmem %s2, 48
  %v206 = vld [vmem:[%s205] sm:$0xff]
  %v207 = vld [vmem:[%s205 + $0x8] sm:$0xff]
  %v208 = vmul.f32 %v206, %v27
  %v209 = vmul.f32 %v207, %v28
  %210 = vadd.xlane.f32.xlu0 %v208
  %v211 = vpop.xlane.xlu0 %210
  %212 = vadd.xlane.f32.xlu0 %v209
  %v213 = vpop.xlane.xlu0 %212
  %v214 = vsub.f32 0.0, %v211
  %v215 = vsub.f32 0.0, %v213
  %v216 = vmin.f32 %v214, 0.0
  %v217 = vmin.f32 %v215, 0.0
  %v218 = vand.u32 2147483647, %v214
  %v219 = vand.u32 2147483647, %v215
  %v220 = vsub.f32 0.0, %v218
  %v221 = vsub.f32 0.0, %v219
  %v222 = vmul.f32 %v220, 1.442695
  %v223 = vpow.pop %v222
  %v224 = vmul.f32 %v221, 1.442695
  %v225 = vpow.pop %v224
  %v226 = vadd.f32 %v223, 1.0
  %v227 = vadd.f32 %v225, 1.0
  %v228 = vlog2.pop %v226
  %v229 = vmul.f32 %v228, 0.6931472
  %v230 = vlog2.pop %v227
  %v231 = vmul.f32 %v230, 0.6931472
  %v232 = vsub.f32 %v216, %v229
  %v233 = vsub.f32 %v217, %v231
  %v234 = vmul.f32 %v232, %v25
  %v235 = vmul.f32 %v233, %v26
  %v236 = vsel %vm57, %v234, 0.0
  %v237 = vsel %vm57, %v235, 0.0
  %v238 = vadd.f32 %v236, %v237
  %239 = vadd.xlane.f32.xlu0 %v238
  %v240 = vpop.xlane.xlu0 %239
  %v241 = vrot.slane %v240, 4
  %v242 = vadd.f32 %v240, %v241
  %v243 = vrot.slane %v242, 2
  %v244 = vadd.f32 %v242, %v243
  %v245 = vrot.slane %v244, 1
  %v246 = vadd.f32 %v244, %v245
  %s247 = vtos %v246
  %v248 = vstv %s247
  %v249 = vadd.f32 %v204, %v248
  %s250 = scalar_lea.vmem %s2, 64
  %v251 = vld [vmem:[%s250] sm:$0xff]
  %v252 = vld [vmem:[%s250 + $0x8] sm:$0xff]
  %v253 = vmul.f32 %v251, %v27
  %v254 = vmul.f32 %v252, %v28
  %255 = vadd.xlane.f32.xlu0 %v253
  %v256 = vpop.xlane.xlu0 %255
  %257 = vadd.xlane.f32.xlu0 %v254
  %v258 = vpop.xlane.xlu0 %257
  %v259 = vsub.f32 0.0, %v256
  %v260 = vsub.f32 0.0, %v258
  %v261 = vmin.f32 %v259, 0.0
  %v262 = vmin.f32 %v260, 0.0
  %v263 = vand.u32 2147483647, %v259
  %v264 = vand.u32 2147483647, %v260
  %v265 = vsub.f32 0.0, %v263
  %v266 = vsub.f32 0.0, %v264
  %v267 = vmul.f32 %v265, 1.442695
  %v268 = vpow.pop %v267
  %v269 = vmul.f32 %v266, 1.442695
  %v270 = vpow.pop %v269
  %v271 = vadd.f32 %v268, 1.0
  %v272 = vadd.f32 %v270, 1.0
  %v273 = vlog2.pop %v271
  %v274 = vmul.f32 %v273, 0.6931472
  %v275 = vlog2.pop %v272
  %v276 = vmul.f32 %v275, 0.6931472
  %v277 = vsub.f32 %v261, %v274
  %v278 = vsub.f32 %v262, %v276
  %v279 = vmul.f32 %v277, %v25
  %v280 = vmul.f32 %v278, %v26
  %v281 = vsel %vm57, %v279, 0.0
  %v282 = vsel %vm57, %v280, 0.0
  %v283 = vadd.f32 %v281, %v282
  %284 = vadd.xlane.f32.xlu0 %v283
  %v285 = vpop.xlane.xlu0 %284
  %v286 = vrot.slane %v285, 4
  %v287 = vadd.f32 %v285, %v286
  %v288 = vrot.slane %v287, 2
  %v289 = vadd.f32 %v287, %v288
  %v290 = vrot.slane %v289, 1
  %v291 = vadd.f32 %v289, %v290
  %s292 = vtos %v291
  %v293 = vstv %s292
  %v294 = vadd.f32 %v249, %v293
  %s295 = scalar_lea.vmem %s2, 80
  %v296 = vld [vmem:[%s295] sm:$0xff]
  %v297 = vld [vmem:[%s295 + $0x8] sm:$0xff]
  %v298 = vmul.f32 %v296, %v27
  %v299 = vmul.f32 %v297, %v28
  %300 = vadd.xlane.f32.xlu0 %v298
  %v301 = vpop.xlane.xlu0 %300
  %302 = vadd.xlane.f32.xlu0 %v299
  %v303 = vpop.xlane.xlu0 %302
  %v304 = vsub.f32 0.0, %v301
  %v305 = vsub.f32 0.0, %v303
  %v306 = vmin.f32 %v304, 0.0
  %v307 = vmin.f32 %v305, 0.0
  %v308 = vand.u32 2147483647, %v304
  %v309 = vand.u32 2147483647, %v305
  %v310 = vsub.f32 0.0, %v308
  %v311 = vsub.f32 0.0, %v309
  %v312 = vmul.f32 %v310, 1.442695
  %v313 = vpow.pop %v312
  %v314 = vmul.f32 %v311, 1.442695
  %v315 = vpow.pop %v314
  %v316 = vadd.f32 %v313, 1.0
  %v317 = vadd.f32 %v315, 1.0
  %v318 = vlog2.pop %v316
  %v319 = vmul.f32 %v318, 0.6931472
  %v320 = vlog2.pop %v317
  %v321 = vmul.f32 %v320, 0.6931472
  %v322 = vsub.f32 %v306, %v319
  %v323 = vsub.f32 %v307, %v321
  %v324 = vmul.f32 %v322, %v25
  %v325 = vmul.f32 %v323, %v26
  %v326 = vsel %vm57, %v324, 0.0
  %v327 = vsel %vm57, %v325, 0.0
  %v328 = vadd.f32 %v326, %v327
  %329 = vadd.xlane.f32.xlu0 %v328
  %v330 = vpop.xlane.xlu0 %329
  %v331 = vrot.slane %v330, 4
  %v332 = vadd.f32 %v330, %v331
  %v333 = vrot.slane %v332, 2
  %v334 = vadd.f32 %v332, %v333
  %v335 = vrot.slane %v334, 1
  %v336 = vadd.f32 %v334, %v335
  %s337 = vtos %v336
  %v338 = vstv %s337
  %v339 = vadd.f32 %v294, %v338
  %s340 = scalar_lea.vmem %s2, 96
  %v341 = vld [vmem:[%s340] sm:$0xff]
  %v342 = vld [vmem:[%s340 + $0x8] sm:$0xff]
  %v343 = vmul.f32 %v341, %v27
  %v344 = vmul.f32 %v342, %v28
  %345 = vadd.xlane.f32.xlu0 %v343
  %v346 = vpop.xlane.xlu0 %345
  %347 = vadd.xlane.f32.xlu0 %v344
  %v348 = vpop.xlane.xlu0 %347
  %v349 = vsub.f32 0.0, %v346
  %v350 = vsub.f32 0.0, %v348
  %v351 = vmin.f32 %v349, 0.0
  %v352 = vmin.f32 %v350, 0.0
  %v353 = vand.u32 2147483647, %v349
  %v354 = vand.u32 2147483647, %v350
  %v355 = vsub.f32 0.0, %v353
  %v356 = vsub.f32 0.0, %v354
  %v357 = vmul.f32 %v355, 1.442695
  %v358 = vpow.pop %v357
  %v359 = vmul.f32 %v356, 1.442695
  %v360 = vpow.pop %v359
  %v361 = vadd.f32 %v358, 1.0
  %v362 = vadd.f32 %v360, 1.0
  %v363 = vlog2.pop %v361
  %v364 = vmul.f32 %v363, 0.6931472
  %v365 = vlog2.pop %v362
  %v366 = vmul.f32 %v365, 0.6931472
  %v367 = vsub.f32 %v351, %v364
  %v368 = vsub.f32 %v352, %v366
  %v369 = vmul.f32 %v367, %v25
  %v370 = vmul.f32 %v368, %v26
  %v371 = vsel %vm57, %v369, 0.0
  %v372 = vsel %vm57, %v370, 0.0
  %v373 = vadd.f32 %v371, %v372
  %374 = vadd.xlane.f32.xlu0 %v373
  %v375 = vpop.xlane.xlu0 %374
  %v376 = vrot.slane %v375, 4
  %v377 = vadd.f32 %v375, %v376
  %v378 = vrot.slane %v377, 2
  %v379 = vadd.f32 %v377, %v378
  %v380 = vrot.slane %v379, 1
  %v381 = vadd.f32 %v379, %v380
  %s382 = vtos %v381
  %v383 = vstv %s382
  %v384 = vadd.f32 %v339, %v383
  %s385 = scalar_lea.vmem %s2, 112
  %v386 = vld [vmem:[%s385] sm:$0xff]
  %v387 = vld [vmem:[%s385 + $0x8] sm:$0xff]
  %v388 = vmul.f32 %v386, %v27
  %v389 = vmul.f32 %v387, %v28
  %390 = vadd.xlane.f32.xlu0 %v388
  %v391 = vpop.xlane.xlu0 %390
  %392 = vadd.xlane.f32.xlu0 %v389
  %v393 = vpop.xlane.xlu0 %392
  %v394 = vsub.f32 0.0, %v391
  %v395 = vsub.f32 0.0, %v393
  %v396 = vmin.f32 %v394, 0.0
  %v397 = vmin.f32 %v395, 0.0
  %v398 = vand.u32 2147483647, %v394
  %v399 = vand.u32 2147483647, %v395
  %v400 = vsub.f32 0.0, %v398
  %v401 = vsub.f32 0.0, %v399
  %v402 = vmul.f32 %v400, 1.442695
  %v403 = vpow.pop %v402
  %v404 = vmul.f32 %v401, 1.442695
  %v405 = vpow.pop %v404
  %v406 = vadd.f32 %v403, 1.0
  %v407 = vadd.f32 %v405, 1.0
  %v408 = vlog2.pop %v406
  %v409 = vmul.f32 %v408, 0.6931472
  %v410 = vlog2.pop %v407
  %v411 = vmul.f32 %v410, 0.6931472
  %v412 = vsub.f32 %v396, %v409
  %v413 = vsub.f32 %v397, %v411
  %v414 = vmul.f32 %v412, %v25
  %v415 = vmul.f32 %v413, %v26
  %v416 = vsel %vm57, %v414, 0.0
  %v417 = vsel %vm57, %v415, 0.0
  %v418 = vadd.f32 %v416, %v417
  %419 = vadd.xlane.f32.xlu0 %v418
  %v420 = vpop.xlane.xlu0 %419
  %v421 = vrot.slane %v420, 4
  %v422 = vadd.f32 %v420, %v421
  %v423 = vrot.slane %v422, 2
  %v424 = vadd.f32 %v422, %v423
  %v425 = vrot.slane %v424, 1
  %v426 = vadd.f32 %v424, %v425
  %s427 = vtos %v426
  %v428 = vstv %s427
  %v429 = vadd.f32 %v384, %v428
  %s430 = scalar_lea.vmem %s2, 128
  %v431 = vld [vmem:[%s430] sm:$0xff]
  %v432 = vld [vmem:[%s430 + $0x8] sm:$0xff]
  %v433 = vmul.f32 %v431, %v27
  %v434 = vmul.f32 %v432, %v28
  %435 = vadd.xlane.f32.xlu0 %v433
  %v436 = vpop.xlane.xlu0 %435
  %437 = vadd.xlane.f32.xlu0 %v434
  %v438 = vpop.xlane.xlu0 %437
  %v439 = vsub.f32 0.0, %v436
  %v440 = vsub.f32 0.0, %v438
  %v441 = vmin.f32 %v439, 0.0
  %v442 = vmin.f32 %v440, 0.0
  %v443 = vand.u32 2147483647, %v439
  %v444 = vand.u32 2147483647, %v440
  %v445 = vsub.f32 0.0, %v443
  %v446 = vsub.f32 0.0, %v444
  %v447 = vmul.f32 %v445, 1.442695
  %v448 = vpow.pop %v447
  %v449 = vmul.f32 %v446, 1.442695
  %v450 = vpow.pop %v449
  %v451 = vadd.f32 %v448, 1.0
  %v452 = vadd.f32 %v450, 1.0
  %v453 = vlog2.pop %v451
  %v454 = vmul.f32 %v453, 0.6931472
  %v455 = vlog2.pop %v452
  %v456 = vmul.f32 %v455, 0.6931472
  %v457 = vsub.f32 %v441, %v454
  %v458 = vsub.f32 %v442, %v456
  %v459 = vmul.f32 %v457, %v25
  %v460 = vmul.f32 %v458, %v26
  %v461 = vsel %vm57, %v459, 0.0
  %v462 = vsel %vm57, %v460, 0.0
  %v463 = vadd.f32 %v461, %v462
  %464 = vadd.xlane.f32.xlu0 %v463
  %v465 = vpop.xlane.xlu0 %464
  %v466 = vrot.slane %v465, 4
  %v467 = vadd.f32 %v465, %v466
  %v468 = vrot.slane %v467, 2
  %v469 = vadd.f32 %v467, %v468
  %v470 = vrot.slane %v469, 1
  %v471 = vadd.f32 %v469, %v470
  %s472 = vtos %v471
  %v473 = vstv %s472
  %v474 = vadd.f32 %v429, %v473
  %s475 = scalar_lea.vmem %s2, 144
  %v476 = vld [vmem:[%s475] sm:$0xff]
  %v477 = vld [vmem:[%s475 + $0x8] sm:$0xff]
  %v478 = vmul.f32 %v476, %v27
  %v479 = vmul.f32 %v477, %v28
  %480 = vadd.xlane.f32.xlu0 %v478
  %v481 = vpop.xlane.xlu0 %480
  %482 = vadd.xlane.f32.xlu0 %v479
  %v483 = vpop.xlane.xlu0 %482
  %v484 = vsub.f32 0.0, %v481
  %v485 = vsub.f32 0.0, %v483
  %v486 = vmin.f32 %v484, 0.0
  %v487 = vmin.f32 %v485, 0.0
  %v488 = vand.u32 2147483647, %v484
  %v489 = vand.u32 2147483647, %v485
  %v490 = vsub.f32 0.0, %v488
  %v491 = vsub.f32 0.0, %v489
  %v492 = vmul.f32 %v490, 1.442695
  %v493 = vpow.pop %v492
  %v494 = vmul.f32 %v491, 1.442695
  %v495 = vpow.pop %v494
  %v496 = vadd.f32 %v493, 1.0
  %v497 = vadd.f32 %v495, 1.0
  %v498 = vlog2.pop %v496
  %v499 = vmul.f32 %v498, 0.6931472
  %v500 = vlog2.pop %v497
  %v501 = vmul.f32 %v500, 0.6931472
  %v502 = vsub.f32 %v486, %v499
  %v503 = vsub.f32 %v487, %v501
  %v504 = vmul.f32 %v502, %v25
  %v505 = vmul.f32 %v503, %v26
  %v506 = vsel %vm57, %v504, 0.0
  %v507 = vsel %vm57, %v505, 0.0
  %v508 = vadd.f32 %v506, %v507
  %509 = vadd.xlane.f32.xlu0 %v508
  %v510 = vpop.xlane.xlu0 %509
  %v511 = vrot.slane %v510, 4
  %v512 = vadd.f32 %v510, %v511
  %v513 = vrot.slane %v512, 2
  %v514 = vadd.f32 %v512, %v513
  %v515 = vrot.slane %v514, 1
  %v516 = vadd.f32 %v514, %v515
  %s517 = vtos %v516
  %v518 = vstv %s517
  %v519 = vadd.f32 %v474, %v518
  %s520 = scalar_lea.vmem %s2, 160
  %v521 = vld [vmem:[%s520] sm:$0xff]
  %v522 = vld [vmem:[%s520 + $0x8] sm:$0xff]
  %v523 = vmul.f32 %v521, %v27
  %v524 = vmul.f32 %v522, %v28
  %525 = vadd.xlane.f32.xlu0 %v523
  %v526 = vpop.xlane.xlu0 %525
  %527 = vadd.xlane.f32.xlu0 %v524
  %v528 = vpop.xlane.xlu0 %527
  %v529 = vsub.f32 0.0, %v526
  %v530 = vsub.f32 0.0, %v528
  %v531 = vmin.f32 %v529, 0.0
  %v532 = vmin.f32 %v530, 0.0
  %v533 = vand.u32 2147483647, %v529
  %v534 = vand.u32 2147483647, %v530
  %v535 = vsub.f32 0.0, %v533
  %v536 = vsub.f32 0.0, %v534
  %v537 = vmul.f32 %v535, 1.442695
  %v538 = vpow.pop %v537
  %v539 = vmul.f32 %v536, 1.442695
  %v540 = vpow.pop %v539
  %v541 = vadd.f32 %v538, 1.0
  %v542 = vadd.f32 %v540, 1.0
  %v543 = vlog2.pop %v541
  %v544 = vmul.f32 %v543, 0.6931472
  %v545 = vlog2.pop %v542
  %v546 = vmul.f32 %v545, 0.6931472
  %v547 = vsub.f32 %v531, %v544
  %v548 = vsub.f32 %v532, %v546
  %v549 = vmul.f32 %v547, %v25
  %v550 = vmul.f32 %v548, %v26
  %v551 = vsel %vm57, %v549, 0.0
  %v552 = vsel %vm57, %v550, 0.0
  %v553 = vadd.f32 %v551, %v552
  %554 = vadd.xlane.f32.xlu0 %v553
  %v555 = vpop.xlane.xlu0 %554
  %v556 = vrot.slane %v555, 4
  %v557 = vadd.f32 %v555, %v556
  %v558 = vrot.slane %v557, 2
  %v559 = vadd.f32 %v557, %v558
  %v560 = vrot.slane %v559, 1
  %v561 = vadd.f32 %v559, %v560
  %s562 = vtos %v561
  %v563 = vstv %s562
  %v564 = vadd.f32 %v519, %v563
  %s565 = scalar_lea.vmem %s2, 176
  %v566 = vld [vmem:[%s565] sm:$0xff]
  %v567 = vld [vmem:[%s565 + $0x8] sm:$0xff]
  %v568 = vmul.f32 %v566, %v27
  %v569 = vmul.f32 %v567, %v28
  %570 = vadd.xlane.f32.xlu0 %v568
  %v571 = vpop.xlane.xlu0 %570
  %572 = vadd.xlane.f32.xlu0 %v569
  %v573 = vpop.xlane.xlu0 %572
  %v574 = vsub.f32 0.0, %v571
  %v575 = vsub.f32 0.0, %v573
  %v576 = vmin.f32 %v574, 0.0
  %v577 = vmin.f32 %v575, 0.0
  %v578 = vand.u32 2147483647, %v574
  %v579 = vand.u32 2147483647, %v575
  %v580 = vsub.f32 0.0, %v578
  %v581 = vsub.f32 0.0, %v579
  %v582 = vmul.f32 %v580, 1.442695
  %v583 = vpow.pop %v582
  %v584 = vmul.f32 %v581, 1.442695
  %v585 = vpow.pop %v584
  %v586 = vadd.f32 %v583, 1.0
  %v587 = vadd.f32 %v585, 1.0
  %v588 = vlog2.pop %v586
  %v589 = vmul.f32 %v588, 0.6931472
  %v590 = vlog2.pop %v587
  %v591 = vmul.f32 %v590, 0.6931472
  %v592 = vsub.f32 %v576, %v589
  %v593 = vsub.f32 %v577, %v591
  %v594 = vmul.f32 %v592, %v25
  %v595 = vmul.f32 %v593, %v26
  %v596 = vsel %vm57, %v594, 0.0
  %v597 = vsel %vm57, %v595, 0.0
  %v598 = vadd.f32 %v596, %v597
  %599 = vadd.xlane.f32.xlu0 %v598
  %v600 = vpop.xlane.xlu0 %599
  %v601 = vrot.slane %v600, 4
  %v602 = vadd.f32 %v600, %v601
  %v603 = vrot.slane %v602, 2
  %v604 = vadd.f32 %v602, %v603
  %v605 = vrot.slane %v604, 1
  %v606 = vadd.f32 %v604, %v605
  %s607 = vtos %v606
  %v608 = vstv %s607
  %v609 = vadd.f32 %v564, %v608
  %s610 = scalar_lea.vmem %s2, 192
  %v611 = vld [vmem:[%s610] sm:$0xff]
  %v612 = vld [vmem:[%s610 + $0x8] sm:$0xff]
  %v613 = vmul.f32 %v611, %v27
  %v614 = vmul.f32 %v612, %v28
  %615 = vadd.xlane.f32.xlu0 %v613
  %v616 = vpop.xlane.xlu0 %615
  %617 = vadd.xlane.f32.xlu0 %v614
  %v618 = vpop.xlane.xlu0 %617
  %v619 = vsub.f32 0.0, %v616
  %v620 = vsub.f32 0.0, %v618
  %v621 = vmin.f32 %v619, 0.0
  %v622 = vmin.f32 %v620, 0.0
  %v623 = vand.u32 2147483647, %v619
  %v624 = vand.u32 2147483647, %v620
  %v625 = vsub.f32 0.0, %v623
  %v626 = vsub.f32 0.0, %v624
  %v627 = vmul.f32 %v625, 1.442695
  %v628 = vpow.pop %v627
  %v629 = vmul.f32 %v626, 1.442695
  %v630 = vpow.pop %v629
  %v631 = vadd.f32 %v628, 1.0
  %v632 = vadd.f32 %v630, 1.0
  %v633 = vlog2.pop %v631
  %v634 = vmul.f32 %v633, 0.6931472
  %v635 = vlog2.pop %v632
  %v636 = vmul.f32 %v635, 0.6931472
  %v637 = vsub.f32 %v621, %v634
  %v638 = vsub.f32 %v622, %v636
  %v639 = vmul.f32 %v637, %v25
  %v640 = vmul.f32 %v638, %v26
  %v641 = vsel %vm57, %v639, 0.0
  %v642 = vsel %vm57, %v640, 0.0
  %v643 = vadd.f32 %v641, %v642
  %644 = vadd.xlane.f32.xlu0 %v643
  %v645 = vpop.xlane.xlu0 %644
  %v646 = vrot.slane %v645, 4
  %v647 = vadd.f32 %v645, %v646
  %v648 = vrot.slane %v647, 2
  %v649 = vadd.f32 %v647, %v648
  %v650 = vrot.slane %v649, 1
  %v651 = vadd.f32 %v649, %v650
  %s652 = vtos %v651
  %v653 = vstv %s652
  %v654 = vadd.f32 %v609, %v653
  %s655 = scalar_lea.vmem %s2, 208
  %v656 = vld [vmem:[%s655] sm:$0xff]
  %v657 = vld [vmem:[%s655 + $0x8] sm:$0xff]
  %v658 = vmul.f32 %v656, %v27
  %v659 = vmul.f32 %v657, %v28
  %660 = vadd.xlane.f32.xlu0 %v658
  %v661 = vpop.xlane.xlu0 %660
  %662 = vadd.xlane.f32.xlu0 %v659
  %v663 = vpop.xlane.xlu0 %662
  %v664 = vsub.f32 0.0, %v661
  %v665 = vsub.f32 0.0, %v663
  %v666 = vmin.f32 %v664, 0.0
  %v667 = vmin.f32 %v665, 0.0
  %v668 = vand.u32 2147483647, %v664
  %v669 = vand.u32 2147483647, %v665
  %v670 = vsub.f32 0.0, %v668
  %v671 = vsub.f32 0.0, %v669
  %v672 = vmul.f32 %v670, 1.442695
  %v673 = vpow.pop %v672
  %v674 = vmul.f32 %v671, 1.442695
  %v675 = vpow.pop %v674
  %v676 = vadd.f32 %v673, 1.0
  %v677 = vadd.f32 %v675, 1.0
  %v678 = vlog2.pop %v676
  %v679 = vmul.f32 %v678, 0.6931472
  %v680 = vlog2.pop %v677
  %v681 = vmul.f32 %v680, 0.6931472
  %v682 = vsub.f32 %v666, %v679
  %v683 = vsub.f32 %v667, %v681
  %v684 = vmul.f32 %v682, %v25
  %v685 = vmul.f32 %v683, %v26
  %v686 = vsel %vm57, %v684, 0.0
  %v687 = vsel %vm57, %v685, 0.0
  %v688 = vadd.f32 %v686, %v687
  %689 = vadd.xlane.f32.xlu0 %v688
  %v690 = vpop.xlane.xlu0 %689
  %v691 = vrot.slane %v690, 4
  %v692 = vadd.f32 %v690, %v691
  %v693 = vrot.slane %v692, 2
  %v694 = vadd.f32 %v692, %v693
  %v695 = vrot.slane %v694, 1
  %v696 = vadd.f32 %v694, %v695
  %s697 = vtos %v696
  %v698 = vstv %s697
  %v699 = vadd.f32 %v654, %v698
  %s700 = scalar_lea.vmem %s2, 224
  %v701 = vld [vmem:[%s700] sm:$0xff]
  %v702 = vld [vmem:[%s700 + $0x8] sm:$0xff]
  %v703 = vmul.f32 %v701, %v27
  %v704 = vmul.f32 %v702, %v28
  %705 = vadd.xlane.f32.xlu0 %v703
  %v706 = vpop.xlane.xlu0 %705
  %707 = vadd.xlane.f32.xlu0 %v704
  %v708 = vpop.xlane.xlu0 %707
  %v709 = vsub.f32 0.0, %v706
  %v710 = vsub.f32 0.0, %v708
  %v711 = vmin.f32 %v709, 0.0
  %v712 = vmin.f32 %v710, 0.0
  %v713 = vand.u32 2147483647, %v709
  %v714 = vand.u32 2147483647, %v710
  %v715 = vsub.f32 0.0, %v713
  %v716 = vsub.f32 0.0, %v714
  %v717 = vmul.f32 %v715, 1.442695
  %v718 = vpow.pop %v717
  %v719 = vmul.f32 %v716, 1.442695
  %v720 = vpow.pop %v719
  %v721 = vadd.f32 %v718, 1.0
  %v722 = vadd.f32 %v720, 1.0
  %v723 = vlog2.pop %v721
  %v724 = vmul.f32 %v723, 0.6931472
  %v725 = vlog2.pop %v722
  %v726 = vmul.f32 %v725, 0.6931472
  %v727 = vsub.f32 %v711, %v724
  %v728 = vsub.f32 %v712, %v726
  %v729 = vmul.f32 %v727, %v25
  %v730 = vmul.f32 %v728, %v26
  %v731 = vsel %vm57, %v729, 0.0
  %v732 = vsel %vm57, %v730, 0.0
  %v733 = vadd.f32 %v731, %v732
  %734 = vadd.xlane.f32.xlu0 %v733
  %v735 = vpop.xlane.xlu0 %734
  %v736 = vrot.slane %v735, 4
  %v737 = vadd.f32 %v735, %v736
  %v738 = vrot.slane %v737, 2
  %v739 = vadd.f32 %v737, %v738
  %v740 = vrot.slane %v739, 1
  %v741 = vadd.f32 %v739, %v740
  %s742 = vtos %v741
  %v743 = vstv %s742
  %v744 = vadd.f32 %v699, %v743
  %s745 = scalar_lea.vmem %s2, 240
  %v746 = vld [vmem:[%s745] sm:$0xff]
  %v747 = vld [vmem:[%s745 + $0x8] sm:$0xff]
  %v748 = vmul.f32 %v746, %v27
  %v749 = vmul.f32 %v747, %v28
  %750 = vadd.xlane.f32.xlu0 %v748
  %v751 = vpop.xlane.xlu0 %750
  %752 = vadd.xlane.f32.xlu0 %v749
  %v753 = vpop.xlane.xlu0 %752
  %v754 = vsub.f32 0.0, %v751
  %v755 = vsub.f32 0.0, %v753
  %v756 = vmin.f32 %v754, 0.0
  %v757 = vmin.f32 %v755, 0.0
  %v758 = vand.u32 2147483647, %v754
  %v759 = vand.u32 2147483647, %v755
  %v760 = vsub.f32 0.0, %v758
  %v761 = vsub.f32 0.0, %v759
  %v762 = vmul.f32 %v760, 1.442695
  %v763 = vpow.pop %v762
  %v764 = vmul.f32 %v761, 1.442695
  %v765 = vpow.pop %v764
  %v766 = vadd.f32 %v763, 1.0
  %v767 = vadd.f32 %v765, 1.0
  %v768 = vlog2.pop %v766
  %v769 = vmul.f32 %v768, 0.6931472
  %v770 = vlog2.pop %v767
  %v771 = vmul.f32 %v770, 0.6931472
  %v772 = vsub.f32 %v756, %v769
  %v773 = vsub.f32 %v757, %v771
  %v774 = vmul.f32 %v772, %v25
  %v775 = vmul.f32 %v773, %v26
  %v776 = vsel %vm57, %v774, 0.0
  %v777 = vsel %vm57, %v775, 0.0
  %v778 = vadd.f32 %v776, %v777
  %779 = vadd.xlane.f32.xlu0 %v778
  %v780 = vpop.xlane.xlu0 %779
  %v781 = vrot.slane %v780, 4
  %v782 = vadd.f32 %v780, %v781
  %v783 = vrot.slane %v782, 2
  %v784 = vadd.f32 %v782, %v783
  %v785 = vrot.slane %v784, 1
  %v786 = vadd.f32 %v784, %v785
  %s787 = vtos %v786
  %v788 = vstv %s787
  %v789 = vadd.f32 %v744, %v788
  %790 = vst [vmem:[%s3] sm:$0xff] %v789
  // Predicated region
  $region14: #{skipgram_forward.1} parent=0 // pred_check
    _
  $region15: #{skipgram_forward.1} parent=0 // pred_check_branch
    %792 = sbr.rel (0) target = $region17
  $region16: #{skipgram_forward.1} parent=0 // pred_region
    _
  $region17: #{skipgram_forward.1} parent=0 // pred_fallthru
    _
  // Predicated region
  $region18: #{skipgram_forward.1} parent=0 // pred_check
    _
  $region19: #{skipgram_forward.1} parent=0 // pred_check_branch
    %794 = sbr.rel (0) target = $region21
  $region20: #{skipgram_forward.1} parent=0 // pred_region
    _
  $region21: #{skipgram_forward.1} parent=0 // pred_fallthru
    _

</llo_original>
